<compile_context>
chip_gen: v7x
topology: tpu7x:2x2x1
jax: 0.10.0
libtpu: 0.0.40
codegen_flags: <defaults>
</compile_context>

<pallas_src>
from functools import partial

import jax
import jax.numpy as jnp
from jax import lax
from jax.experimental import pallas as pl
from jax.experimental.pallas import tpu as pltpu


def attention_kernel(x_ref, gamma_ref, beta_ref, wqkv_ref, wout_ref, bout_ref,
                     o_ref, xn_ref, k_ref, v_ref,
                     *, heads, dim_head, scale, eps, n_real, q_tile, kv_tile):
    inner = heads * dim_head
    n_pad = x_ref.shape[0]
    qi = pl.program_id(1)

    # ---- Once per batch element (qi == 0): LayerNorm the full sequence and
    # project K/V.  Results live in bf16 VMEM scratch and persist across the
    # (arbitrary) query-tile axis.
    @pl.when(qi == 0)
    def _():
        x = x_ref[...].astype(jnp.float32)                        # (N, D)
        mean = jnp.mean(x, axis=-1, keepdims=True)
        var = jnp.mean((x - mean) ** 2, axis=-1, keepdims=True)
        xn = (x - mean) * lax.rsqrt(var + eps) * gamma_ref[...] + beta_ref[...]
        xn_bf = xn.astype(jnp.bfloat16)
        xn_ref[...] = xn_bf
        # K/V projection: bf16 operands, f32 accumulation on the MXU.
        kv = jnp.dot(xn_bf, wqkv_ref[:, inner:],
                     preferred_element_type=jnp.float32)          # (N, 2*inner)
        # 'n (h d) -> h n d' once per batch element; store as bf16.
        k_ref[...] = (kv[:, :inner].reshape(n_pad, heads, dim_head)
                      .transpose(1, 0, 2).astype(jnp.bfloat16))
        v_ref[...] = (kv[:, inner:].reshape(n_pad, heads, dim_head)
                      .transpose(1, 0, 2).astype(jnp.bfloat16))

    # ---- Per query tile: slice already-normalized rows out of scratch,
    # project Q (scale folded into the small Q tensor).
    tq = q_tile
    q_start = pl.multiple_of(qi * tq, tq)
    xq = xn_ref[pl.ds(q_start, tq), :]                            # (TQ, D) bf16
    q = jnp.dot(xq, wqkv_ref[:, :inner],
                preferred_element_type=jnp.float32) * scale       # (TQ, inner) f32
    qh = (q.reshape(tq, heads, dim_head).transpose(1, 0, 2)
          .astype(jnp.bfloat16))                                  # (H, TQ, dh)

    # ---- Online-softmax (flash) over K/V chunks: working set O(H*TQ*TK).
    num_k = n_pad // kv_tile
    neg_big = jnp.float32(-1e30)

    def kv_step(ki, carry):
        m, l, acc = carry
        k_start = pl.multiple_of(ki * kv_tile, kv_tile)
        kh = k_ref[:, pl.ds(k_start, kv_tile), :]                 # (H, TK, dh) bf16
        vh = v_ref[:, pl.ds(k_start, kv_tile), :]
        s = jnp.einsum('hqd,hkd->hqk', qh, kh,
                       preferred_element_type=jnp.float32)        # (H, TQ, TK) f32
        if n_real < n_pad:  # static: mask padded key positions
            key_idx = k_start + lax.broadcasted_iota(jnp.int32, s.shape, 2)
            s = jnp.where(key_idx < n_real, s, neg_big)
        m_new = jnp.maximum(m, jnp.max(s, axis=-1, keepdims=True))
        alpha = jnp.exp(m - m_new)
        p = jnp.exp(s - m_new)                                    # f32 (v5e-safe)
        l_new = alpha * l + jnp.sum(p, axis=-1, keepdims=True)
        acc_new = alpha * acc + jnp.einsum(
            'hqk,hkd->hqd', p.astype(jnp.bfloat16), vh,
            preferred_element_type=jnp.float32)
        return m_new, l_new, acc_new

    m0 = jnp.full((heads, tq, 1), neg_big, jnp.float32)
    l0 = jnp.zeros((heads, tq, 1), jnp.float32)
    acc0 = jnp.zeros((heads, tq, dim_head), jnp.float32)
    _, l_fin, acc_fin = lax.fori_loop(0, num_k, kv_step, (m0, l0, acc0))

    # Softmax normalization (EUP reciprocal), 'h q d -> q (h d)', out proj.
    o = acc_fin * pl.reciprocal(l_fin, approx=True)
    o = o.transpose(1, 0, 2).reshape(tq, inner)
    proj = jnp.dot(o.astype(jnp.bfloat16), wout_ref[...],
                   preferred_element_type=jnp.float32) + bout_ref[...]
    o_ref[...] = proj.astype(o_ref.dtype)


def attention_forward(x, gamma, beta, wqkv, wout, bout, *, heads, dim_head,
                      q_tile=128):
    B, N, D = x.shape
    inner = heads * dim_head

    # Query/KV tiling.  Pad the sequence (with key masking inside the kernel)
    # instead of collapsing the tile to N for non-divisible N.
    if N % q_tile == 0:
        TQ, N_pad = q_tile, N
    elif N <= q_tile:
        TQ, N_pad = N, N
    else:
        TQ = q_tile
        N_pad = pl.cdiv(N, q_tile) * q_tile
    num_q = N_pad // TQ
    TK = TQ  # K/V chunk size for the online-softmax loop

    x_in = x if N_pad == N else jnp.pad(x, ((0, 0), (0, N_pad - N), (0, 0)))

    # Weights should already be bf16 (prepared once by the caller); only cast
    # here as a fallback.
    wqkv_bf = wqkv if wqkv.dtype == jnp.bfloat16 else wqkv.astype(jnp.bfloat16)
    wout_bf = wout if wout.dtype == jnp.bfloat16 else wout.astype(jnp.bfloat16)

    kernel = partial(attention_kernel, heads=heads, dim_head=dim_head,
                     scale=dim_head ** (-0.5), eps=1e-5, n_real=N,
                     q_tile=TQ, kv_tile=TK)

    # Explicit scoped-VMEM budget: double-buffered blocks + scratch + headroom.
    est = (2 * N_pad * D * 4                      # x block (f32, 2 buffers)
           + 2 * TQ * D * 4                       # out block (f32, 2 buffers)
           + 2 * 2 * (D * 3 * inner + inner * D)  # bf16 weights (2 buffers)
           + N_pad * D * 2                        # xn scratch (bf16)
           + 2 * heads * N_pad * dim_head * 2     # K/V scratch (bf16)
           + heads * TQ * (TK + 4 * dim_head + 4) * 4  # flash intermediates
           + (4 << 20))                           # headroom
    vmem_limit = min(48 << 20, max(16 << 20, est))

    out = pl.pallas_call(
        kernel,
        out_shape=jax.ShapeDtypeStruct((B, N_pad, D), x.dtype),
        grid=(B, num_q),
        in_specs=[
            pl.BlockSpec((pl.Squeezed(), N_pad, D), lambda b, qi: (b, 0, 0)),  # x (full seq)
            pl.BlockSpec((1, D), lambda b, qi: (0, 0)),                        # LN gamma
            pl.BlockSpec((1, D), lambda b, qi: (0, 0)),                        # LN beta
            pl.BlockSpec((D, 3 * inner), lambda b, qi: (0, 0)),                # W_qkv (bf16)
            pl.BlockSpec((inner, D), lambda b, qi: (0, 0)),                    # W_out (bf16)
            pl.BlockSpec((1, D), lambda b, qi: (0, 0)),                        # b_out
        ],
        out_specs=pl.BlockSpec((pl.Squeezed(), TQ, D), lambda b, qi: (b, qi, 0)),
        scratch_shapes=[
            pltpu.VMEM((N_pad, D), jnp.bfloat16),                 # normalized x
            pltpu.VMEM((heads, N_pad, dim_head), jnp.bfloat16),   # K
            pltpu.VMEM((heads, N_pad, dim_head), jnp.bfloat16),   # V
        ],
        compiler_params=pltpu.CompilerParams(
            dimension_semantics=("parallel", "arbitrary"),
            vmem_limit_bytes=vmem_limit),
    )(x_in, gamma, beta, wqkv_bf, wout_bf, bout)

    return out[:, :N, :] if N_pad != N else out


def attention_reference(x, gamma, beta, wqkv, wout, bout, *, heads, dim_head):
    """Pure-JAX f32 reference matching the PyTorch forward (eval mode)."""
    B, N, D = x.shape
    inner = heads * dim_head
    mean = jnp.mean(x, axis=-1, keepdims=True)
    var = jnp.mean((x - mean) ** 2, axis=-1, keepdims=True)
    xn = (x - mean) / jnp.sqrt(var + 1e-5) * gamma[0] + beta[0]
    qkv = xn @ wqkv
    q, k, v = jnp.split(qkv, 3, axis=-1)

    def split_heads(t):
        return t.reshape(B, N, heads, dim_head).transpose(0, 2, 1, 3)

    q, k, v = map(split_heads, (q, k, v))
    dots = jnp.einsum('bhnd,bhmd->bhnm', q, k) * (dim_head ** -0.5)
    attn = jax.nn.softmax(dots, axis=-1)
    out = jnp.einsum('bhnm,bhmd->bhnd', attn, v)
    out = out.transpose(0, 2, 1, 3).reshape(B, N, inner)
    return out @ wout + bout[0]


if __name__ == "__main__":
    # Small shapes consistent with the module: dim=32, heads=4, dim_head=16.
    B, N, D = 2, 8, 32
    HEADS, DIM_HEAD = 4, 16
    INNER = HEADS * DIM_HEAD

    key = jax.random.PRNGKey(0)
    kx, kq, ko = jax.random.split(key, 3)

    x = jax.random.normal(kx, (B, N, D), dtype=jnp.float32)
    gamma = jnp.ones((1, D), dtype=jnp.float32)          # LayerNorm default init
    beta = jnp.zeros((1, D), dtype=jnp.float32)
    wqkv = jax.random.normal(kq, (D, 3 * INNER), dtype=jnp.float32) * 0.05
    wout = jax.random.normal(ko, (INNER, D), dtype=jnp.float32) * 0.05
    bout = jnp.zeros((1, D), dtype=jnp.float32)

    # One-time parameter preparation: cast matmul weights to bf16 here, not
    # inside every forward call.
    wqkv_bf = wqkv.astype(jnp.bfloat16)
    wout_bf = wout.astype(jnp.bfloat16)

    out = attention_forward(x, gamma, beta, wqkv_bf, wout_bf, bout,
                            heads=HEADS, dim_head=DIM_HEAD)
    out = jax.block_until_ready(out)

    ref = attention_reference(x, gamma, beta, wqkv, wout, bout,
                              heads=HEADS, dim_head=DIM_HEAD)
    assert out.shape == (B, N, D)
    # bf16 matmuls + bf16 activations + approx reciprocal -> relative check.
    rel_err = float(jnp.max(jnp.abs(out - ref)) / (jnp.max(jnp.abs(ref)) + 1e-6))
    assert rel_err < 2e-2, f"mismatch vs JAX reference, rel_err={rel_err}"

    print("KERNEL_OK")
</pallas_src>

<mosaic_0001>
module attributes {stable_mosaic.version = 11 : i64} {
  func.func @attention_kernel(%arg0: i32, %arg1: i32, %arg2: memref<1x8x32xf32, #tpu.memory_space<vmem>>, %arg3: memref<1x32xf32, #tpu.memory_space<vmem>>, %arg4: memref<1x32xf32, #tpu.memory_space<vmem>>, %arg5: memref<32x192xbf16, #tpu.memory_space<vmem>>, %arg6: memref<64x32xbf16, #tpu.memory_space<vmem>>, %arg7: memref<1x32xf32, #tpu.memory_space<vmem>>, %arg8: memref<1x8x32xf32, #tpu.memory_space<vmem>>, %arg9: memref<8x32xbf16, #tpu.memory_space<vmem>>, %arg10: memref<4x8x16xbf16, #tpu.memory_space<vmem>>, %arg11: memref<4x8x16xbf16, #tpu.memory_space<vmem>>) attributes {dimension_semantics = [#tpu.dimension_semantics<parallel>, #tpu.dimension_semantics<arbitrary>], iteration_bounds = array<i64: 2, 1>, scalar_prefetch = 0 : i64, scratch_operands = 3 : i64, tpu.core_type = #tpu.core_type<tc>, window_params = [{transform_indices = @transform_0, window_bounds = array<i64: 1, 8, 32>}, {pipeline_mode = #tpu.pipeline_mode<synchronous>, transform_indices = @transform_1, window_bounds = array<i64: 1, 32>}, {pipeline_mode = #tpu.pipeline_mode<synchronous>, transform_indices = @transform_2, window_bounds = array<i64: 1, 32>}, {pipeline_mode = #tpu.pipeline_mode<synchronous>, transform_indices = @transform_3, window_bounds = array<i64: 32, 192>}, {pipeline_mode = #tpu.pipeline_mode<synchronous>, transform_indices = @transform_4, window_bounds = array<i64: 64, 32>}, {pipeline_mode = #tpu.pipeline_mode<synchronous>, transform_indices = @transform_5, window_bounds = array<i64: 1, 32>}, {transform_indices = @transform_6, window_bounds = array<i64: 1, 8, 32>}]} {
    %c0_i32 = arith.constant 0 : i32
    %0 = arith.cmpi eq, %arg1, %c0_i32 : i32
    %1 = arith.extui %0 : i1 to i32
    %c0_i32_0 = arith.constant 0 : i32
    %2 = arith.cmpi ne, %1, %c0_i32_0 : i32
    scf.if %2 {
      %c0_25 = arith.constant 0 : index
      %c0_26 = arith.constant 0 : index
      %c0_27 = arith.constant 0 : index
      %55 = vector.load %arg2[%c0_25, %c0_26, %c0_27] : memref<1x8x32xf32, #tpu.memory_space<vmem>>, vector<1x8x32xf32>
      %56 = vector.shape_cast %55 : vector<1x8x32xf32> to vector<8x32xf32>
      %cst_28 = arith.constant dense<0.000000e+00> : vector<8xf32>
      %57 = vector.multi_reduction <add>, %56, %cst_28 [1] : vector<8x32xf32> to vector<8xf32>
      %58 = vector.shape_cast %57 : vector<8xf32> to vector<8x1xf32>
      %cst_29 = arith.constant 3.200000e+01 : f32
      %59 = vector.broadcast %cst_29 : f32 to vector<8x1xf32>
      %60 = arith.divf %58, %59 : vector<8x1xf32>
      %61 = vector.broadcast %60 : vector<8x1xf32> to vector<8x32xf32>
      %62 = arith.subf %56, %61 : vector<8x32xf32>
      %63 = arith.mulf %62, %62 : vector<8x32xf32>
      %cst_30 = arith.constant dense<0.000000e+00> : vector<8xf32>
      %64 = vector.multi_reduction <add>, %63, %cst_30 [1] : vector<8x32xf32> to vector<8xf32>
      %65 = vector.shape_cast %64 : vector<8xf32> to vector<8x1xf32>
      %cst_31 = arith.constant 3.200000e+01 : f32
      %66 = vector.broadcast %cst_31 : f32 to vector<8x1xf32>
      %67 = arith.divf %65, %66 : vector<8x1xf32>
      %68 = vector.broadcast %60 : vector<8x1xf32> to vector<8x32xf32>
      %69 = arith.subf %56, %68 : vector<8x32xf32>
      %cst_32 = arith.constant 9.99999974E-6 : f32
      %70 = vector.broadcast %cst_32 : f32 to vector<8x1xf32>
      %71 = arith.addf %67, %70 : vector<8x1xf32>
      %72 = math.rsqrt %71 : vector<8x1xf32>
      %73 = vector.broadcast %72 : vector<8x1xf32> to vector<8x32xf32>
      %74 = arith.mulf %69, %73 : vector<8x32xf32>
      %c0_33 = arith.constant 0 : index
      %c0_34 = arith.constant 0 : index
      %75 = vector.load %arg3[%c0_33, %c0_34] : memref<1x32xf32, #tpu.memory_space<vmem>>, vector<1x32xf32>
      %76 = vector.broadcast %75 : vector<1x32xf32> to vector<8x32xf32>
      %77 = arith.mulf %74, %76 : vector<8x32xf32>
      %c0_35 = arith.constant 0 : index
      %c0_36 = arith.constant 0 : index
      %78 = vector.load %arg4[%c0_35, %c0_36] : memref<1x32xf32, #tpu.memory_space<vmem>>, vector<1x32xf32>
      %79 = vector.broadcast %78 : vector<1x32xf32> to vector<8x32xf32>
      %80 = arith.addf %77, %79 : vector<8x32xf32>
      %81 = arith.truncf %80 : vector<8x32xf32> to vector<8x32xbf16>
      %c0_37 = arith.constant 0 : index
      %c0_38 = arith.constant 0 : index
      %82 = vector.load %arg9[%c0_37, %c0_38] : memref<8x32xbf16, #tpu.memory_space<vmem>>, vector<8x32xbf16>
      tpu.vector_store %arg9[%c0_37, %c0_38], %81 {strides = array<i32>} : memref<8x32xbf16, #tpu.memory_space<vmem>>, vector<8x32xbf16>,
      %c0_39 = arith.constant 0 : index
      %c64 = arith.constant 64 : index
      %83 = vector.load %arg5[%c0_39, %c64] : memref<32x192xbf16, #tpu.memory_space<vmem>>, vector<32x128xbf16>
      %cst_40 = arith.constant dense<0.000000e+00> : vector<8x128xf32>
      %84 = tpu.matmul %81, %83, %cst_40 {dimension_numbers = #tpu.dot_dimension_numbers<[1], [0], [0], [1], [0, 0, 1, 1], [], []>} : vector<8x32xbf16>, vector<32x128xbf16>, vector<8x128xf32> -> vector<8x128xf32>
      %85 = vector.extract_strided_slice %84 {offsets = [0, 0], sizes = [8, 64], strides = [1, 1]} : vector<8x128xf32> to vector<8x64xf32>
      %86 = vector.shape_cast %85 : vector<8x64xf32> to vector<8x4x16xf32>
      %87 = tpu.transpose %86, [1, 0, 2] : vector<8x4x16xf32> -> vector<4x8x16xf32>
      %88 = arith.truncf %87 : vector<4x8x16xf32> to vector<4x8x16xbf16>
      %c0_41 = arith.constant 0 : index
      %c0_42 = arith.constant 0 : index
      %c0_43 = arith.constant 0 : index
      %89 = vector.load %arg10[%c0_41, %c0_42, %c0_43] : memref<4x8x16xbf16, #tpu.memory_space<vmem>>, vector<4x8x16xbf16>
      tpu.vector_store %arg10[%c0_41, %c0_42, %c0_43], %88 {strides = array<i32>} : memref<4x8x16xbf16, #tpu.memory_space<vmem>>, vector<4x8x16xbf16>,
      %90 = vector.extract_strided_slice %84 {offsets = [0, 64], sizes = [8, 64], strides = [1, 1]} : vector<8x128xf32> to vector<8x64xf32>
      %91 = vector.shape_cast %90 : vector<8x64xf32> to vector<8x4x16xf32>
      %92 = tpu.transpose %91, [1, 0, 2] : vector<8x4x16xf32> -> vector<4x8x16xf32>
      %93 = arith.truncf %92 : vector<4x8x16xf32> to vector<4x8x16xbf16>
      %c0_44 = arith.constant 0 : index
      %c0_45 = arith.constant 0 : index
      %c0_46 = arith.constant 0 : index
      %94 = vector.load %arg11[%c0_44, %c0_45, %c0_46] : memref<4x8x16xbf16, #tpu.memory_space<vmem>>, vector<4x8x16xbf16>
      tpu.vector_store %arg11[%c0_44, %c0_45, %c0_46], %93 {strides = array<i32>} : memref<4x8x16xbf16, #tpu.memory_space<vmem>>, vector<4x8x16xbf16>,
    } else {
    }
    %c8_i32 = arith.constant 8 : i32
    %3 = arith.muli %arg1, %c8_i32 : i32
    %4 = tpu.assume_multiple %3, 8 : i32
    %5 = arith.index_cast %4 : i32 to index
    %c0 = arith.constant 0 : index
    %6 = vector.load %arg9[%5, %c0] : memref<8x32xbf16, #tpu.memory_space<vmem>>, vector<8x32xbf16>
    %c0_1 = arith.constant 0 : index
    %c0_2 = arith.constant 0 : index
    %7 = vector.load %arg5[%c0_1, %c0_2] : memref<32x192xbf16, #tpu.memory_space<vmem>>, vector<32x64xbf16>
    %cst = arith.constant dense<0.000000e+00> : vector<8x64xf32>
    %8 = tpu.matmul %6, %7, %cst {dimension_numbers = #tpu.dot_dimension_numbers<[1], [0], [0], [1], [0, 0, 1, 1], [], []>} : vector<8x32xbf16>, vector<32x64xbf16>, vector<8x64xf32> -> vector<8x64xf32>
    %cst_3 = arith.constant 2.500000e-01 : f32
    %9 = vector.broadcast %cst_3 : f32 to vector<8x64xf32>
    %10 = arith.mulf %8, %9 : vector<8x64xf32>
    %11 = vector.shape_cast %10 : vector<8x64xf32> to vector<8x4x16xf32>
    %12 = tpu.transpose %11, [1, 0, 2] : vector<8x4x16xf32> -> vector<4x8x16xf32>
    %13 = arith.truncf %12 : vector<4x8x16xf32> to vector<4x8x16xbf16>
    %cst_4 = arith.constant -1.000000e+30 : f32
    %14 = vector.broadcast %cst_4 : f32 to vector<4x8x1xf32>
    %cst_5 = arith.constant 0.000000e+00 : f32
    %15 = vector.broadcast %cst_5 : f32 to vector<4x8x1xf32>
    %cst_6 = arith.constant 0.000000e+00 : f32
    %16 = vector.broadcast %cst_6 : f32 to vector<4x8x16xf32>
    %c0_i32_7 = arith.constant 0 : i32
    %c8_i32_8 = arith.constant 8 : i32
    %17 = arith.muli %c0_i32_7, %c8_i32_8 : i32
    %18 = tpu.assume_multiple %17, 8 : i32
    %c0_9 = arith.constant 0 : index
    %19 = arith.index_cast %18 : i32 to index
    %c0_10 = arith.constant 0 : index
    %20 = vector.load %arg10[%c0_9, %19, %c0_10] : memref<4x8x16xbf16, #tpu.memory_space<vmem>>, vector<4x8x16xbf16>
    %c0_11 = arith.constant 0 : index
    %21 = arith.index_cast %18 : i32 to index
    %c0_12 = arith.constant 0 : index
    %22 = vector.load %arg11[%c0_11, %21, %c0_12] : memref<4x8x16xbf16, #tpu.memory_space<vmem>>, vector<4x8x16xbf16>
    "tpu.trace_start"() <{level = 10 : i32, message = "hqd,hkd->hqk"}> : () -> ()
    %cst_13 = arith.constant dense<0.000000e+00> : vector<4x8x8xf32>
    %23 = tpu.matmul %13, %20, %cst_13 {dimension_numbers = #tpu.dot_dimension_numbers<[2], [2], [1], [1], [0, 0, 0, 1, 1, 1], [0], [0]>} : vector<4x8x16xbf16>, vector<4x8x16xbf16>, vector<4x8x8xf32> -> vector<4x8x8xf32>
    "tpu.trace_stop"() : () -> ()
    %cst_14 = arith.constant dense<0xFF800000> : vector<4x8xf32>
    %24 = vector.multi_reduction <maximumf>, %23, %cst_14 [2] : vector<4x8x8xf32> to vector<4x8xf32>
    %25 = vector.shape_cast %24 : vector<4x8xf32> to vector<4x8x1xf32>
    %26 = arith.maximumf %14, %25 : vector<4x8x1xf32>
    %27 = arith.subf %14, %26 : vector<4x8x1xf32>
    %28 = math.exp %27 : vector<4x8x1xf32>
    %29 = vector.broadcast %26 : vector<4x8x1xf32> to vector<4x8x8xf32>
    %30 = arith.subf %23, %29 : vector<4x8x8xf32>
    %31 = math.exp %30 : vector<4x8x8xf32>
    %32 = arith.mulf %28, %15 : vector<4x8x1xf32>
    %cst_15 = arith.constant dense<0.000000e+00> : vector<4x8xf32>
    %33 = vector.multi_reduction <add>, %31, %cst_15 [2] : vector<4x8x8xf32> to vector<4x8xf32>
    %34 = vector.shape_cast %33 : vector<4x8xf32> to vector<4x8x1xf32>
    %35 = arith.addf %32, %34 : vector<4x8x1xf32>
    %36 = vector.broadcast %28 : vector<4x8x1xf32> to vector<4x8x16xf32>
    %37 = arith.mulf %36, %16 : vector<4x8x16xf32>
    %38 = arith.truncf %31 : vector<4x8x8xf32> to vector<4x8x8xbf16>
    "tpu.trace_start"() <{level = 10 : i32, message = "hqk,hkd->hqd"}> : () -> ()
    %cst_16 = arith.constant dense<0.000000e+00> : vector<4x8x16xf32>
    %39 = tpu.matmul %38, %22, %cst_16 {dimension_numbers = #tpu.dot_dimension_numbers<[2], [1], [1], [2], [0, 0, 0, 1, 1, 2], [0], [0]>} : vector<4x8x8xbf16>, vector<4x8x16xbf16>, vector<4x8x16xf32> -> vector<4x8x16xf32>
    "tpu.trace_stop"() : () -> ()
    %40 = arith.addf %37, %39 : vector<4x8x16xf32>
    %c1_i32 = arith.constant 1 : i32
    %41 = tpu.reciprocal %35 {approx = true} : vector<4x8x1xf32> -> vector<4x8x1xf32>
    %42 = vector.broadcast %41 : vector<4x8x1xf32> to vector<4x8x16xf32>
    %43 = arith.mulf %40, %42 : vector<4x8x16xf32>
    %44 = tpu.transpose %43, [1, 0, 2] : vector<4x8x16xf32> -> vector<8x4x16xf32>
    %45 = vector.shape_cast %44 : vector<8x4x16xf32> to vector<8x64xf32>
    %46 = arith.truncf %45 : vector<8x64xf32> to vector<8x64xbf16>
    %c0_17 = arith.constant 0 : index
    %c0_18 = arith.constant 0 : index
    %47 = vector.load %arg6[%c0_17, %c0_18] : memref<64x32xbf16, #tpu.memory_space<vmem>>, vector<64x32xbf16>
    %cst_19 = arith.constant dense<0.000000e+00> : vector<8x32xf32>
    %48 = tpu.matmul %46, %47, %cst_19 {dimension_numbers = #tpu.dot_dimension_numbers<[1], [0], [0], [1], [0, 0, 1, 1], [], []>} : vector<8x64xbf16>, vector<64x32xbf16>, vector<8x32xf32> -> vector<8x32xf32>
    %c0_20 = arith.constant 0 : index
    %c0_21 = arith.constant 0 : index
    %49 = vector.load %arg7[%c0_20, %c0_21] : memref<1x32xf32, #tpu.memory_space<vmem>>, vector<1x32xf32>
    %50 = vector.broadcast %49 : vector<1x32xf32> to vector<8x32xf32>
    %51 = arith.addf %48, %50 : vector<8x32xf32>
    %c0_22 = arith.constant 0 : index
    %c0_23 = arith.constant 0 : index
    %c0_24 = arith.constant 0 : index
    %52 = vector.load %arg8[%c0_22, %c0_23, %c0_24] : memref<1x8x32xf32, #tpu.memory_space<vmem>>, vector<1x8x32xf32>
    %53 = vector.shape_cast %52 : vector<1x8x32xf32> to vector<8x32xf32>
    %54 = vector.shape_cast %51 : vector<8x32xf32> to vector<1x8x32xf32>
    tpu.vector_store %arg8[%c0_22, %c0_23, %c0_24], %54 {strides = array<i32>} : memref<1x8x32xf32, #tpu.memory_space<vmem>>, vector<1x8x32xf32>,
    return
  }
  func.func @transform_0(%arg0: i32, %arg1: i32) -> (i32, i32, i32) {
    %c0_i32 = arith.constant 0 : i32
    %c0_i32_0 = arith.constant 0 : i32
    %c0_i32_1 = arith.constant 0 : i32
    return %arg0, %c0_i32, %c0_i32_0 : i32, i32, i32
  }
  func.func @transform_1(%arg0: i32, %arg1: i32) -> (i32, i32) {
    %c0_i32 = arith.constant 0 : i32
    %c0_i32_0 = arith.constant 0 : i32
    %c0_i32_1 = arith.constant 0 : i32
    return %c0_i32, %c0_i32_0 : i32, i32
  }
  func.func @transform_2(%arg0: i32, %arg1: i32) -> (i32, i32) {
    %c0_i32 = arith.constant 0 : i32
    %c0_i32_0 = arith.constant 0 : i32
    %c0_i32_1 = arith.constant 0 : i32
    return %c0_i32, %c0_i32_0 : i32, i32
  }
  func.func @transform_3(%arg0: i32, %arg1: i32) -> (i32, i32) {
    %c0_i32 = arith.constant 0 : i32
    %c0_i32_0 = arith.constant 0 : i32
    %c0_i32_1 = arith.constant 0 : i32
    return %c0_i32, %c0_i32_0 : i32, i32
  }
  func.func @transform_4(%arg0: i32, %arg1: i32) -> (i32, i32) {
    %c0_i32 = arith.constant 0 : i32
    %c0_i32_0 = arith.constant 0 : i32
    %c0_i32_1 = arith.constant 0 : i32
    return %c0_i32, %c0_i32_0 : i32, i32
  }
  func.func @transform_5(%arg0: i32, %arg1: i32) -> (i32, i32) {
    %c0_i32 = arith.constant 0 : i32
    %c0_i32_0 = arith.constant 0 : i32
    %c0_i32_1 = arith.constant 0 : i32
    return %c0_i32, %c0_i32_0 : i32, i32
  }
  func.func @transform_6(%arg0: i32, %arg1: i32) -> (i32, i32, i32) {
    %c0_i32 = arith.constant 0 : i32
    %c0_i32_0 = arith.constant 0 : i32
    return %arg0, %arg1, %c0_i32 : i32, i32, i32
  }
}

</mosaic_0001>

<llo_original>
// kernel: tpu_custom_call.1
$region0: #{tpu_custom_call.1}
  #allocation0 [shape = 'u32[]', space=smem, size = 0x4, offset = 0x4, fixed_abs, tag = 'smem constant byte address 0x4 - core index']
  #allocation1 [shape = 'u32[144,128]{1,0:T(1,128)}', space=vmem, size = 0x12000, scoped, tag = 'internal scratch']
  #allocation2 [shape = 'bf16[8,32]{1,0:T(8,128)(2,1)}', space=vmem, size = 0x800, scoped, tag = 'scratch operand']
  #allocation3 [shape = 'bf16[4,8,16]{2,1,0:T(8,128)(2,1)}', space=vmem, size = 0x2000, scoped, tag = 'scratch operand']
  #allocation4 [shape = 'bf16[4,8,16]{2,1,0:T(8,128)(2,1)}', space=vmem, size = 0x2000, scoped, tag = 'scratch operand']
  %s0 = inlined_call_operand.vmem [shape: f32[2,8,32], index: 0, kind: input, shape index: {}]
  %s1 = inlined_call_operand.vmem [shape: f32[1,32], index: 1, kind: input, shape index: {}]
  %s2 = inlined_call_operand.vmem [shape: f32[1,32], index: 2, kind: input, shape index: {}]
  %s3 = inlined_call_operand.vmem [shape: bf16[32,192], index: 3, kind: input, shape index: {}]
  %s4 = inlined_call_operand.vmem [shape: bf16[64,32], index: 4, kind: input, shape index: {}]
  %s5 = inlined_call_operand.vmem [shape: f32[1,32], index: 5, kind: input, shape index: {}]
  %s6 = inlined_call_operand.hbm [shape: f32[2,8,32], index: 6, kind: output, shape index: {}]
  %s7 = sld [smem:[#allocation0]]
  $region61: #{tpu_custom_call.1} parent=0
    _
  %s9 = ssub.s32 1, %s7
  %s10 = scalar_select 0, %s9, %s7
  $region1: #{tpu_custom_call.1} parent=0
    #allocation5 [shape = 'u8[8192]{0}', space=vmem, size = 0x2000, scoped, tag = 'output window, operand 0']
    #allocation6 [shape = 's32[2]{0}', space=sflag, size = 0x8, scoped, tag = 'scoped memory for tpu_custom_call.1']
    %11 = vsyncpa [#allocation6], 0
    %s12 = scalar_lea.sflag [#allocation6], 1
    %13 = vsyncpa %s12, 0
    loop: start=0, step=1, limit=4
    $region2: #{tpu_custom_call.1} parent=1 // loop_pre_header
      _
    $region3: #{tpu_custom_call.1} parent=1 // loop_header
      %s15 = sphi 0, %s19
      %p16 = scmp.ge.s32.totalorder %s15, 4
      %s22 = sphi 0, %s34
      %s23 = sphi 0, %s30
      %s24 = sphi 0, %s22
      %s25 = sphi 0, %s23
      %s26 = sphi 0, %s24
      %s27 = sphi 0, %s25
      %s37 = sphi 0, %s39
      %s40 = sphi 0, %s37
      %s41 = sphi 0, %s40
      %s57 = sphi 0, %s41
      %s61 = sphi 0, %s61
      %s63 = sphi 0, %s61
      %s64 = sphi 0, %s63
      %s78 = sphi 0, %s64
      %s82 = sphi 0, %s82
      %s84 = sphi 0, %s82
      %s85 = sphi 0, %s84
      %s99 = sphi 0, %s85
      %s103 = sphi 0, %s103
      %s105 = sphi 0, %s103
      %s106 = sphi 0, %s105
      %s120 = sphi 0, %s106
      %s124 = sphi 0, %s124
      %s126 = sphi 0, %s124
      %s127 = sphi 0, %s126
      %s141 = sphi 0, %s127
      %s145 = sphi 0, %s145
      %s147 = sphi 0, %s145
      %s148 = sphi 0, %s147
      %s162 = sphi 0, %s148
      %s170 = sphi 0, %s172
      %s173 = sphi 0, %s170
      %s174 = sphi 0, %s173
      %s190 = sphi 0, %s174
    $region4: #{tpu_custom_call.1} parent=1 // loop_header_branch
      %18 = sbr.rel (%p16) target = $region8
    $region5: #{tpu_custom_call.1} parent=1 // loop_body
      %s20 = ssub.s32 %s15, 1
      %s21 = ssub.s32 %s15, 2
      %s28 = sadd.s32 1, %s23
      %p29 = scmp.ge.s32.totalorder %s28, 1
      %s30 = scalar_select %p29, 0, %s28
      %s31 = sadd.s32 1, %s22
      %s32 = scalar_select %p29, %s31, %s22
      %p33 = scmp.ge.s32.totalorder %s32, 2
      %s34 = scalar_select %p33, 0, %s32
      %s35 = ssub.s32 %s22, %s34
      %p36 = scmp.eq.s32.totalorder %s35, 0
      %s38 = sadd.s32 %s37, 1
      %s39 = scalar_select %p36, %s37, %s38
      %p42 = pneg %p36
      %p43 = scmp.eq.s32.totalorder %s15, 1
      %p44 = por %p42, %p43
      %p45 = scmp.ne.s32.totalorder %s37, %s40
      %p46 = scmp.eq.s32.totalorder %s15, 0
      %p47 = por %p45, %p46
      %p48 = scmp.ne.s32.totalorder %s37, %s40
      %p49 = scmp.eq.s32.totalorder %s20, 1
      %p50 = por %p48, %p49
      %p51 = scmp.ne.s32.totalorder %s40, %s41
      %p52 = scmp.eq.s32.totalorder %s20, 0
      %p53 = por %p51, %p52
      %p54 = scmp.ne.s32.totalorder %s40, %s41
      %p55 = scmp.eq.s32.totalorder %s21, 1
      %p56 = por %p54, %p55
      %p58 = scmp.ne.s32.totalorder %s41, %s57
      %p59 = scmp.eq.s32.totalorder %s21, 0
      %p60 = por %p58, %p59
      %s62 = sadd.s32 %s61, 1
      %p65 = scmp.eq.s32.totalorder %s15, 1
      %p66 = scmp.ne.s32.totalorder %s61, %s63
      %p67 = scmp.eq.s32.totalorder %s15, 0
      %p68 = por %p66, %p67
      %p69 = scmp.ne.s32.totalorder %s61, %s63
      %p70 = scmp.eq.s32.totalorder %s20, 1
      %p71 = por %p69, %p70
      %p72 = scmp.ne.s32.totalorder %s63, %s64
      %p73 = scmp.eq.s32.totalorder %s20, 0
      %p74 = por %p72, %p73
      %p75 = scmp.ne.s32.totalorder %s63, %s64
      %p76 = scmp.eq.s32.totalorder %s21, 1
      %p77 = por %p75, %p76
      %p79 = scmp.ne.s32.totalorder %s64, %s78
      %p80 = scmp.eq.s32.totalorder %s21, 0
      %p81 = por %p79, %p80
      %s83 = sadd.s32 %s82, 1
      %p86 = scmp.eq.s32.totalorder %s15, 1
      %p87 = scmp.ne.s32.totalorder %s82, %s84
      %p88 = scmp.eq.s32.totalorder %s15, 0
      %p89 = por %p87, %p88
      %p90 = scmp.ne.s32.totalorder %s82, %s84
      %p91 = scmp.eq.s32.totalorder %s20, 1
      %p92 = por %p90, %p91
      %p93 = scmp.ne.s32.totalorder %s84, %s85
      %p94 = scmp.eq.s32.totalorder %s20, 0
      %p95 = por %p93, %p94
      %p96 = scmp.ne.s32.totalorder %s84, %s85
      %p97 = scmp.eq.s32.totalorder %s21, 1
      %p98 = por %p96, %p97
      %p100 = scmp.ne.s32.totalorder %s85, %s99
      %p101 = scmp.eq.s32.totalorder %s21, 0
      %p102 = por %p100, %p101
      %s104 = sadd.s32 %s103, 1
      %p107 = scmp.eq.s32.totalorder %s15, 1
      %p108 = scmp.ne.s32.totalorder %s103, %s105
      %p109 = scmp.eq.s32.totalorder %s15, 0
      %p110 = por %p108, %p109
      %p111 = scmp.ne.s32.totalorder %s103, %s105
      %p112 = scmp.eq.s32.totalorder %s20, 1
      %p113 = por %p111, %p112
      %p114 = scmp.ne.s32.totalorder %s105, %s106
      %p115 = scmp.eq.s32.totalorder %s20, 0
      %p116 = por %p114, %p115
      %p117 = scmp.ne.s32.totalorder %s105, %s106
      %p118 = scmp.eq.s32.totalorder %s21, 1
      %p119 = por %p117, %p118
      %p121 = scmp.ne.s32.totalorder %s106, %s120
      %p122 = scmp.eq.s32.totalorder %s21, 0
      %p123 = por %p121, %p122
      %s125 = sadd.s32 %s124, 1
      %p128 = scmp.eq.s32.totalorder %s15, 1
      %p129 = scmp.ne.s32.totalorder %s124, %s126
      %p130 = scmp.eq.s32.totalorder %s15, 0
      %p131 = por %p129, %p130
      %p132 = scmp.ne.s32.totalorder %s124, %s126
      %p133 = scmp.eq.s32.totalorder %s20, 1
      %p134 = por %p132, %p133
      %p135 = scmp.ne.s32.totalorder %s126, %s127
      %p136 = scmp.eq.s32.totalorder %s20, 0
      %p137 = por %p135, %p136
      %p138 = scmp.ne.s32.totalorder %s126, %s127
      %p139 = scmp.eq.s32.totalorder %s21, 1
      %p140 = por %p138, %p139
      %p142 = scmp.ne.s32.totalorder %s127, %s141
      %p143 = scmp.eq.s32.totalorder %s21, 0
      %p144 = por %p142, %p143
      %s146 = sadd.s32 %s145, 1
      %p149 = scmp.eq.s32.totalorder %s15, 1
      %p150 = scmp.ne.s32.totalorder %s145, %s147
      %p151 = scmp.eq.s32.totalorder %s15, 0
      %p152 = por %p150, %p151
      %p153 = scmp.ne.s32.totalorder %s145, %s147
      %p154 = scmp.eq.s32.totalorder %s20, 1
      %p155 = por %p153, %p154
      %p156 = scmp.ne.s32.totalorder %s147, %s148
      %p157 = scmp.eq.s32.totalorder %s20, 0
      %p158 = por %p156, %p157
      %p159 = scmp.ne.s32.totalorder %s147, %s148
      %p160 = scmp.eq.s32.totalorder %s21, 1
      %p161 = por %p159, %p160
      %p163 = scmp.ne.s32.totalorder %s148, %s162
      %p164 = scmp.eq.s32.totalorder %s21, 0
      %p165 = por %p163, %p164
      %s166 = ssub.s32 %s22, %s34
      %s167 = ssub.s32 %s23, %s30
      %s168 = sor.u32 %s166, %s167
      %p169 = scmp.eq.s32.totalorder %s168, 0
      %s171 = sadd.s32 %s170, 1
      %s172 = scalar_select %p169, %s170, %s171
      %p175 = pneg %p169
      %p176 = scmp.eq.s32.totalorder %s15, 1
      %p177 = por %p175, %p176
      %p178 = scmp.ne.s32.totalorder %s170, %s173
      %p179 = scmp.eq.s32.totalorder %s15, 0
      %p180 = por %p178, %p179
      %p181 = scmp.ne.s32.totalorder %s170, %s173
      %p182 = scmp.eq.s32.totalorder %s20, 1
      %p183 = por %p181, %p182
      %p184 = scmp.ne.s32.totalorder %s173, %s174
      %p185 = scmp.eq.s32.totalorder %s20, 0
      %p186 = por %p184, %p185
      %p187 = scmp.ne.s32.totalorder %s173, %s174
      %p188 = scmp.eq.s32.totalorder %s21, 1
      %p189 = por %p187, %p188
      %p191 = scmp.ne.s32.totalorder %s174, %s190
      %p192 = scmp.eq.s32.totalorder %s21, 0
      %p193 = por %p191, %p192
      %p194 = scmp.le.s32.totalorder 1, %s15
      %p195 = scmp.lt.s32.totalorder %s15, 3
      %p196 = pnand %p194, %p195
      %p197 = pneg %p196
      // Predicated region
      $region9: #{tpu_custom_call.1} parent=5 // pred_check
        _
      $region10: #{tpu_custom_call.1} parent=5 // pred_check_branch
        %199 = sbr.rel (%p196) target = $region12
      $region11: #{tpu_custom_call.1} parent=5 // pred_region
        %s200 = ssub.s32 %s15, 1
        // Predicated region
        $region13: #{tpu_custom_call.1} parent=11 // pred_check
          %p201 = pneg %p74
        $region14: #{tpu_custom_call.1} parent=11 // pred_check_branch
          %203 = sbr.rel (%p201) target = $region16
        $region15: #{tpu_custom_call.1} parent=11 // pred_region
          _
        $region16: #{tpu_custom_call.1} parent=11 // pred_fallthru
          _
        // Predicated region
        $region17: #{tpu_custom_call.1} parent=11 // pred_check
          %p204 = pneg %p95
        $region18: #{tpu_custom_call.1} parent=11 // pred_check_branch
          %206 = sbr.rel (%p204) target = $region20
        $region19: #{tpu_custom_call.1} parent=11 // pred_region
          _
        $region20: #{tpu_custom_call.1} parent=11 // pred_fallthru
          _
        // Predicated region
        $region21: #{tpu_custom_call.1} parent=11 // pred_check
          %p207 = pneg %p116
        $region22: #{tpu_custom_call.1} parent=11 // pred_check_branch
          %209 = sbr.rel (%p207) target = $region24
        $region23: #{tpu_custom_call.1} parent=11 // pred_region
          _
        $region24: #{tpu_custom_call.1} parent=11 // pred_fallthru
          _
        // Predicated region
        $region25: #{tpu_custom_call.1} parent=11 // pred_check
          %p210 = pneg %p137
        $region26: #{tpu_custom_call.1} parent=11 // pred_check_branch
          %212 = sbr.rel (%p210) target = $region28
        $region27: #{tpu_custom_call.1} parent=11 // pred_region
          _
        $region28: #{tpu_custom_call.1} parent=11 // pred_fallthru
          _
        // Predicated region
        $region29: #{tpu_custom_call.1} parent=11 // pred_check
          %p213 = pneg %p158
        $region30: #{tpu_custom_call.1} parent=11 // pred_check_branch
          %215 = sbr.rel (%p213) target = $region32
        $region31: #{tpu_custom_call.1} parent=11 // pred_region
          _
        $region32: #{tpu_custom_call.1} parent=11 // pred_fallthru
          _
      $region12: #{tpu_custom_call.1} parent=5 // pred_fallthru
        _
      %p216 = scmp.lt.s32.totalorder %s15, 2
      // Predicated region
      $region33: #{tpu_custom_call.1} parent=5 // pred_check
        %p217 = pneg %p216
      $region34: #{tpu_custom_call.1} parent=5 // pred_check_branch
        %219 = sbr.rel (%p217) target = $region36
      $region35: #{tpu_custom_call.1} parent=5 // pred_region
        // Predicated region
        $region37: #{tpu_custom_call.1} parent=35 // pred_check
          %p220 = pneg %p47
        $region38: #{tpu_custom_call.1} parent=35 // pred_check_branch
          %222 = sbr.rel (%p220) target = $region40
        $region39: #{tpu_custom_call.1} parent=35 // pred_region
          %p223 = scmp.lt.s32.totalorder %s22, 1
          %s224 = scalar_select %p223, %s22, 1
          %s225 = smul.addr %s224, 8
          %s226 = scalar_lea.vmem %s0, %s225
        $region40: #{tpu_custom_call.1} parent=35 // pred_fallthru
          _
      $region36: #{tpu_custom_call.1} parent=5 // pred_fallthru
        _
      %p227 = scmp.le.s32.totalorder 1, %s15
      %p228 = scmp.lt.s32.totalorder %s15, 3
      %p229 = pnand %p227, %p228
      %p230 = pneg %p229
      // Predicated region
      $region41: #{tpu_custom_call.1} parent=5 // pred_check
        _
      $region42: #{tpu_custom_call.1} parent=5 // pred_check_branch
        %232 = sbr.rel (%p229) target = $region44
      $region43: #{tpu_custom_call.1} parent=5 // pred_region
        %s233 = ssub.s32 %s15, 1
        %p234 = scmp.lt.s32.totalorder %s24, 1
        %s235 = scalar_select %p234, %s24, 1
        %s236 = smul.addr %s235, 8
        %s237 = scalar_lea.vmem %s0, %s236
        %p238 = pneg %p53
        %p239 = pneg %p50
        %p240 = pneg %p74
        %p241 = pneg %p71
        %p242 = pneg %p95
        %p243 = pneg %p92
        %p244 = pneg %p116
        %p245 = pneg %p113
        %p246 = pneg %p137
        %p247 = pneg %p134
        %p248 = pneg %p158
        %p249 = pneg %p155
        %p250 = pneg %p186
        %p251 = pneg %p183
        %s252 = sand.u32 %s173, 1
        %s253 = scalar_lea.sflag [#allocation6], %s252
        %s254 = sand.u32 %s173, 1
        %s255 = smul.addr %s254, 8
        %s256 = scalar_lea.vmem [#allocation5], %s255
        %p257 = scmp.lt.s32.totalorder %s24, 1
        %s258 = scalar_select %p257, %s24, 1
        %s259 = smul.addr %s258, 8
        %s260 = scalar_lea.vmem %s0, %s259
        %p262 = scmp.eq.s32.totalorder %s25, 0
        // Predicated region
        $region45: #{tpu_custom_call.1} parent=43 // pred_check
          %p263 = pneg %p262
        $region46: #{tpu_custom_call.1} parent=43 // pred_check_branch
          %265 = sbr.rel (%p263) target = $region48
        $region47: #{tpu_custom_call.1} parent=43 // pred_region
          %v266 = vld [vmem:[%s260] sm:$0xff]
          %vm267 = vcmask 261120
          %v268 = vsel %vm267, %v266, 0.0
          %269 = vadd.xlane.f32.xlu0 %v268
          %v270 = vpop.xlane.xlu0 %269
          %v271 = vrcp.pop 32.0
          %v272 = vmul.f32 %v270, %v271
          %v273 = vsub.f32 %v266, %v272
          %v274 = vmul.f32 %v273, %v273
          %v275 = vsel %vm267, %v274, 0.0
          %276 = vadd.xlane.f32.xlu0 %v275
          %v277 = vpop.xlane.xlu0 %276
          %v278 = vmul.f32 %v277, %v271
          %v279 = vadd.f32 %v278, 1e-05
          %v280 = vrsqrt.pop %v279
          %v281 = vmul.f32 %v273, %v280
          %v282 = vld [vmem:[%s1] sm:$0x1]
          %v284 = vlaneseq
          %v285 = vshrl.u32 %v284, 7
          %v286 = vsub.s32 0, %v285
          %v287 = vrot.slane %v282, %v286
          %v289 = vmul.f32 %v281, %v287
          %v290 = vld [vmem:[%s2] sm:$0x1]
          %v292 = vlaneseq
          %v293 = vshrl.u32 %v292, 7
          %v294 = vsub.s32 0, %v293
          %v295 = vrot.slane %v290, %v294
          %v297 = vadd.f32 %v289, %v295
          %v298 = vpack.c.bf16 %v297, %v297
          %vm299 = vcmask 257024
          %300 = vst.msk [vmem:[#allocation2] sm:$0xf] %vm299, %v298
          %v301 = vld [vmem:[%s3] sm:$0xff]
          %v302 = vld [vmem:[%s3 + $0x8] sm:$0xff]
          %v303 = vld [vmem:[%s3 + $0x10] sm:$0xff]
          %v304 = vld [vmem:[%s3 + $0x18] sm:$0xff]
          %v309 = vunpack.c.l.b16 %v301
          %v310 = vunpack.c.h.b16 %v301
          %v311 = vunpack.c.l.b16 %v302
          %v312 = vunpack.c.h.b16 %v302
          %v313 = vunpack.c.l.b16 %v303
          %v314 = vunpack.c.h.b16 %v303
          %v315 = vunpack.c.l.b16 %v304
          %v316 = vunpack.c.h.b16 %v304
          %v317 = vpack.c.b16 %v311, %v309
          %v318 = vpack.c.b16 %v312, %v310
          %v319 = vpack.c.b16 %v315, %v313
          %v320 = vpack.c.b16 %v316, %v314
          %321 = vrot.lane.b32.xlu0 %v317, 64
          %v322 = vpop.permute.xlu0 %321
          %323 = vrot.lane.b32.xlu0 %v318, 64
          %v324 = vpop.permute.xlu0 %323
          %325 = vrot.lane.b32.xlu0 %v319, 64
          %v326 = vpop.permute.xlu0 %325
          %327 = vrot.lane.b32.xlu0 %v320, 64
          %v328 = vpop.permute.xlu0 %327
          %vm329 = vcmask 523264
          %v330 = vsel %vm329, %v322, %v324
          %v331 = vsel %vm329, %v326, %v328
          %v335 = vsel %vm267, %v298, 0
          %337 = vmatprep.subr.bf16.mxu0 0
          %338 = vmatpush1.bf16.msra.mxu0 %v330
          %339 = vmatprep.subr.bf16.mxu0 0
          %340 = vmatpush1.bf16.msra.mxu0 %v331
          %341 = vmatprep.subr.bf16.mxu0 0
          %342 = vmatpush1.bf16.msra.mxu0 0
          %343 = vmatprep.subr.bf16.mxu0 0
          %344 = vmatpush1.bf16.msra.mxu0 0
          %345 = vmatprep.subr.bf16.mxu0 0
          %346 = vmatpush1.bf16.msra.mxu0 0
          %347 = vmatprep.subr.bf16.mxu0 0
          %348 = vmatpush1.bf16.msra.mxu0 0
          %349 = vmatprep.subr.bf16.mxu0 0
          %350 = vmatpush1.bf16.msra.mxu0 0
          %351 = vmatprep.subr.bf16.mxu0 0
          %352 = vmatpush1.bf16.msra.mxu0 0
          %353 = vmatprep.subr.bf16.mxu0 0
          %354 = vmatpush1.bf16.msra.mxu0 0
          %355 = vmatprep.subr.bf16.mxu0 0
          %356 = vmatpush1.bf16.msra.mxu0 0
          %357 = vmatprep.subr.bf16.mxu0 0
          %358 = vmatpush1.bf16.msra.mxu0 0
          %359 = vmatprep.subr.bf16.mxu0 0
          %360 = vmatpush1.bf16.msra.mxu0 0
          %361 = vmatprep.subr.bf16.mxu0 0
          %362 = vmatpush1.bf16.msra.mxu0 0
          %363 = vmatprep.subr.bf16.mxu0 0
          %364 = vmatpush1.bf16.msra.mxu0 0
          %365 = vmatprep.subr.bf16.mxu0 0
          %366 = vmatpush1.bf16.msra.mxu0 0
          %367 = vmatprep.subr.bf16.mxu0 0
          %368 = vmatpush1.bf16.msra.mxu0 0
          %369 = vmatprep.mubr.bf16.mxu0 0
          %370 = vmatmul.mubr.bf16.gmra.mrb[0].mxu0 %v335
          %v371 = vpop.f32.mrb[0].mxu0
          %v372 = vadd.f32 0.0, %v371
          %v373 = vpop.f32.mrb[0].mxu0
          %v374 = vpop.f32.mrb[0].mxu0
          %v375 = vpop.f32.mrb[0].mxu0
          %376 = vdwg.mxu0
          %378 = vrot.lane.b32.xlu0 %v372, 112
          %v379 = vpop.permute.xlu0 %378
          %381 = vrot.lane.b32.xlu0 %v372, 96
          %v382 = vpop.permute.xlu0 %381
          %384 = vrot.lane.b32.xlu0 %v372, 80
          %v385 = vpop.permute.xlu0 %384
          %v387 = vcombine.low %v372, %v382
          %v388 = vcombine.high %v372, %v382
          %v390 = vunpack.c.l.s4 1983009808
          %v391 = vunpack.c.0.s8 %v390
          %v392 = vlaneseq
          %v393 = vshrl.u32 %v392, 7
          %v394 = vsub.s32 %v391, %v393
          %v395 = vrot.slane %v387, %v394
          %v397 = vunpack.c.l.s4 1983009808
          %v398 = vunpack.c.0.s8 %v397
          %v399 = vlaneseq
          %v400 = vshrl.u32 %v399, 7
          %v401 = vsub.s32 %v398, %v400
          %v402 = vrot.slane %v388, %v401
          %v403 = vcombine.low %v379, %v385
          %v404 = vcombine.high %v379, %v385
          %v406 = vunpack.c.l.s4 1983009808
          %v407 = vunpack.c.0.s8 %v406
          %v408 = vlaneseq
          %v409 = vshrl.u32 %v408, 7
          %v410 = vsub.s32 %v407, %v409
          %v411 = vrot.slane %v403, %v410
          %v413 = vunpack.c.l.s4 1983009808
          %v414 = vunpack.c.0.s8 %v413
          %v415 = vlaneseq
          %v416 = vshrl.u32 %v415, 7
          %v417 = vsub.s32 %v414, %v416
          %v418 = vrot.slane %v404, %v417
          %v419 = vcombine.low %v395, %v411
          %v420 = vcombine.high %v395, %v411
          %v422 = vunpack.c.l.s4 1934713408
          %v423 = vunpack.c.0.s8 %v422
          %v424 = vlaneseq
          %v425 = vshrl.u32 %v424, 7
          %v426 = vsub.s32 %v423, %v425
          %v427 = vrot.slane %v419, %v426
          %v429 = vunpack.c.l.s4 1934713408
          %v430 = vunpack.c.0.s8 %v429
          %v431 = vlaneseq
          %v432 = vshrl.u32 %v431, 7
          %v433 = vsub.s32 %v430, %v432
          %v434 = vrot.slane %v420, %v433
          %v435 = vcombine.low %v402, %v418
          %v436 = vcombine.high %v402, %v418
          %v438 = vunpack.c.l.s4 1934713408
          %v439 = vunpack.c.0.s8 %v438
          %v440 = vlaneseq
          %v441 = vshrl.u32 %v440, 7
          %v442 = vsub.s32 %v439, %v441
          %v443 = vrot.slane %v435, %v442
          %v445 = vunpack.c.l.s4 1934713408
          %v446 = vunpack.c.0.s8 %v445
          %v447 = vlaneseq
          %v448 = vshrl.u32 %v447, 7
          %v449 = vsub.s32 %v446, %v448
          %v450 = vrot.slane %v436, %v449
          %v451 = vcombine.high %v427, 0.0
          %v452 = vcombine.high %v434, 0.0
          %v453 = vcombine.high %v443, 0.0
          %v454 = vcombine.high %v450, 0.0
          %v455 = vcombine.low %v427, %v434
          %v457 = vunpack.c.l.s4 1983009808
          %v458 = vunpack.c.0.s8 %v457
          %v459 = vlaneseq
          %v460 = vshrl.u32 %v459, 7
          %v461 = vsub.s32 %v458, %v460
          %v462 = vrot.slane %v455, %v461
          %v463 = vcombine.low %v451, %v452
          %v465 = vunpack.c.l.s4 1983009808
          %v466 = vunpack.c.0.s8 %v465
          %v467 = vlaneseq
          %v468 = vshrl.u32 %v467, 7
          %v469 = vsub.s32 %v466, %v468
          %v470 = vrot.slane %v463, %v469
          %v471 = vcombine.low %v443, %v450
          %v473 = vunpack.c.l.s4 1983009808
          %v474 = vunpack.c.0.s8 %v473
          %v475 = vlaneseq
          %v476 = vshrl.u32 %v475, 7
          %v477 = vsub.s32 %v474, %v476
          %v478 = vrot.slane %v471, %v477
          %v479 = vcombine.low %v453, %v454
          %v481 = vunpack.c.l.s4 1983009808
          %v482 = vunpack.c.0.s8 %v481
          %v483 = vlaneseq
          %v484 = vshrl.u32 %v483, 7
          %v485 = vsub.s32 %v482, %v484
          %v486 = vrot.slane %v479, %v485
          %v487 = vcombine.low %v462, %v470
          %v488 = vcombine.high %v462, %v470
          %v490 = vunpack.c.l.s4 1934713408
          %v491 = vunpack.c.0.s8 %v490
          %v492 = vlaneseq
          %v493 = vshrl.u32 %v492, 7
          %v494 = vsub.s32 %v491, %v493
          %v495 = vrot.slane %v487, %v494
          %v497 = vunpack.c.l.s4 1934713408
          %v498 = vunpack.c.0.s8 %v497
          %v499 = vlaneseq
          %v500 = vshrl.u32 %v499, 7
          %v501 = vsub.s32 %v498, %v500
          %v502 = vrot.slane %v488, %v501
          %v503 = vcombine.low %v478, %v486
          %v504 = vcombine.high %v478, %v486
          %v506 = vunpack.c.l.s4 1934713408
          %v507 = vunpack.c.0.s8 %v506
          %v508 = vlaneseq
          %v509 = vshrl.u32 %v508, 7
          %v510 = vsub.s32 %v507, %v509
          %v511 = vrot.slane %v503, %v510
          %v513 = vunpack.c.l.s4 1934713408
          %v514 = vunpack.c.0.s8 %v513
          %v515 = vlaneseq
          %v516 = vshrl.u32 %v515, 7
          %v517 = vsub.s32 %v514, %v516
          %v518 = vrot.slane %v504, %v517
          %v519 = vcombine.low %v495, %v511
          %v520 = vcombine.high %v495, %v511
          %v521 = vcombine.low %v502, %v518
          %v522 = vcombine.high %v502, %v518
          %v523 = vpack.c.bf16 %v519, %v519
          %v524 = vpack.c.bf16 %v520, %v520
          %v525 = vpack.c.bf16 %v521, %v521
          %v526 = vpack.c.bf16 %v522, %v522
          %vm527 = vcmask 125952
          %528 = vst.msk [vmem:[#allocation3] sm:$0xf] %vm527, %v523
          %529 = vst.msk [vmem:[#allocation3 + $0x4] sm:$0xf] %vm527, %v524
          %530 = vst.msk [vmem:[#allocation3 + $0x8] sm:$0xf] %vm527, %v525
          %531 = vst.msk [vmem:[#allocation3 + $0xc] sm:$0xf] %vm527, %v526
          %532 = vrot.lane.b32.xlu0 %v372, 64
          %v533 = vpop.permute.xlu0 %532
          %534 = vrot.lane.b32.xlu0 %v379, 64
          %v535 = vpop.permute.xlu0 %534
          %536 = vrot.lane.b32.xlu0 %v382, 64
          %v537 = vpop.permute.xlu0 %536
          %538 = vrot.lane.b32.xlu0 %v385, 64
          %v539 = vpop.permute.xlu0 %538
          %v544 = vcombine.low %v533, %v537
          %v545 = vcombine.high %v533, %v537
          %v547 = vunpack.c.l.s4 1983009808
          %v548 = vunpack.c.0.s8 %v547
          %v549 = vlaneseq
          %v550 = vshrl.u32 %v549, 7
          %v551 = vsub.s32 %v548, %v550
          %v552 = vrot.slane %v544, %v551
          %v554 = vunpack.c.l.s4 1983009808
          %v555 = vunpack.c.0.s8 %v554
          %v556 = vlaneseq
          %v557 = vshrl.u32 %v556, 7
          %v558 = vsub.s32 %v555, %v557
          %v559 = vrot.slane %v545, %v558
          %v560 = vcombine.low %v535, %v539
          %v561 = vcombine.high %v535, %v539
          %v563 = vunpack.c.l.s4 1983009808
          %v564 = vunpack.c.0.s8 %v563
          %v565 = vlaneseq
          %v566 = vshrl.u32 %v565, 7
          %v567 = vsub.s32 %v564, %v566
          %v568 = vrot.slane %v560, %v567
          %v570 = vunpack.c.l.s4 1983009808
          %v571 = vunpack.c.0.s8 %v570
          %v572 = vlaneseq
          %v573 = vshrl.u32 %v572, 7
          %v574 = vsub.s32 %v571, %v573
          %v575 = vrot.slane %v561, %v574
          %v576 = vcombine.low %v552, %v568
          %v577 = vcombine.high %v552, %v568
          %v579 = vunpack.c.l.s4 1934713408
          %v580 = vunpack.c.0.s8 %v579
          %v581 = vlaneseq
          %v582 = vshrl.u32 %v581, 7
          %v583 = vsub.s32 %v580, %v582
          %v584 = vrot.slane %v576, %v583
          %v586 = vunpack.c.l.s4 1934713408
          %v587 = vunpack.c.0.s8 %v586
          %v588 = vlaneseq
          %v589 = vshrl.u32 %v588, 7
          %v590 = vsub.s32 %v587, %v589
          %v591 = vrot.slane %v577, %v590
          %v592 = vcombine.low %v559, %v575
          %v593 = vcombine.high %v559, %v575
          %v595 = vunpack.c.l.s4 1934713408
          %v596 = vunpack.c.0.s8 %v595
          %v597 = vlaneseq
          %v598 = vshrl.u32 %v597, 7
          %v599 = vsub.s32 %v596, %v598
          %v600 = vrot.slane %v592, %v599
          %v602 = vunpack.c.l.s4 1934713408
          %v603 = vunpack.c.0.s8 %v602
          %v604 = vlaneseq
          %v605 = vshrl.u32 %v604, 7
          %v606 = vsub.s32 %v603, %v605
          %v607 = vrot.slane %v593, %v606
          %v608 = vcombine.high %v584, 0.0
          %v609 = vcombine.high %v591, 0.0
          %v610 = vcombine.high %v600, 0.0
          %v611 = vcombine.high %v607, 0.0
          %v612 = vcombine.low %v584, %v591
          %v614 = vunpack.c.l.s4 1983009808
          %v615 = vunpack.c.0.s8 %v614
          %v616 = vlaneseq
          %v617 = vshrl.u32 %v616, 7
          %v618 = vsub.s32 %v615, %v617
          %v619 = vrot.slane %v612, %v618
          %v620 = vcombine.low %v608, %v609
          %v622 = vunpack.c.l.s4 1983009808
          %v623 = vunpack.c.0.s8 %v622
          %v624 = vlaneseq
          %v625 = vshrl.u32 %v624, 7
          %v626 = vsub.s32 %v623, %v625
          %v627 = vrot.slane %v620, %v626
          %v628 = vcombine.low %v600, %v607
          %v630 = vunpack.c.l.s4 1983009808
          %v631 = vunpack.c.0.s8 %v630
          %v632 = vlaneseq
          %v633 = vshrl.u32 %v632, 7
          %v634 = vsub.s32 %v631, %v633
          %v635 = vrot.slane %v628, %v634
          %v636 = vcombine.low %v610, %v611
          %v638 = vunpack.c.l.s4 1983009808
          %v639 = vunpack.c.0.s8 %v638
          %v640 = vlaneseq
          %v641 = vshrl.u32 %v640, 7
          %v642 = vsub.s32 %v639, %v641
          %v643 = vrot.slane %v636, %v642
          %v644 = vcombine.low %v619, %v627
          %v645 = vcombine.high %v619, %v627
          %v647 = vunpack.c.l.s4 1934713408
          %v648 = vunpack.c.0.s8 %v647
          %v649 = vlaneseq
          %v650 = vshrl.u32 %v649, 7
          %v651 = vsub.s32 %v648, %v650
          %v652 = vrot.slane %v644, %v651
          %v654 = vunpack.c.l.s4 1934713408
          %v655 = vunpack.c.0.s8 %v654
          %v656 = vlaneseq
          %v657 = vshrl.u32 %v656, 7
          %v658 = vsub.s32 %v655, %v657
          %v659 = vrot.slane %v645, %v658
          %v660 = vcombine.low %v635, %v643
          %v661 = vcombine.high %v635, %v643
          %v663 = vunpack.c.l.s4 1934713408
          %v664 = vunpack.c.0.s8 %v663
          %v665 = vlaneseq
          %v666 = vshrl.u32 %v665, 7
          %v667 = vsub.s32 %v664, %v666
          %v668 = vrot.slane %v660, %v667
          %v670 = vunpack.c.l.s4 1934713408
          %v671 = vunpack.c.0.s8 %v670
          %v672 = vlaneseq
          %v673 = vshrl.u32 %v672, 7
          %v674 = vsub.s32 %v671, %v673
          %v675 = vrot.slane %v661, %v674
          %v676 = vcombine.low %v652, %v668
          %v677 = vcombine.high %v652, %v668
          %v678 = vcombine.low %v659, %v675
          %v679 = vcombine.high %v659, %v675
          %v680 = vpack.c.bf16 %v676, %v676
          %v681 = vpack.c.bf16 %v677, %v677
          %v682 = vpack.c.bf16 %v678, %v678
          %v683 = vpack.c.bf16 %v679, %v679
          %684 = vst.msk [vmem:[#allocation4] sm:$0xf] %vm527, %v680
          %685 = vst.msk [vmem:[#allocation4 + $0x4] sm:$0xf] %vm527, %v681
          %686 = vst.msk [vmem:[#allocation4 + $0x8] sm:$0xf] %vm527, %v682
          %687 = vst.msk [vmem:[#allocation4 + $0xc] sm:$0xf] %vm527, %v683
        $region48: #{tpu_custom_call.1} parent=43 // pred_fallthru
          _
        %s688 = smul.u32 %s25, 8
        %s689 = sshra.s32 %s688, 3
        %s690 = sand.u32 %s688, 7
        %s691 = smul.addr %s689, 4
        %s692 = scalar_lea.vmem [#allocation2], %s691
        %v693 = vld [vmem:[%s692] sm:$0xf]
        %v694 = vld [vmem:[%s3] sm:$0xf]
        %v695 = vld [vmem:[%s3 + $0x8] sm:$0xf]
        %v696 = vld [vmem:[%s3 + $0x10] sm:$0xf]
        %v697 = vld [vmem:[%s3 + $0x18] sm:$0xf]
        %v702 = vunpack.c.l.b16 %v694
        %v703 = vunpack.c.l.b16 %v695
        %v704 = vunpack.c.l.b16 %v696
        %v705 = vunpack.c.l.b16 %v697
        %v706 = vpack.c.b16 %v703, %v702
        %v707 = vpack.c.b16 %v705, %v704
        %vm710 = vcmask 261120
        %v712 = vsel %vm710, %v693, 0
        %714 = vmatprep.subr.bf16.mxu0 0
        %715 = vmatpush1.bf16.msra.mxu0 %v706
        %716 = vmatprep.subr.bf16.mxu0 0
        %717 = vmatpush1.bf16.msra.mxu0 %v707
        %718 = vmatprep.subr.bf16.mxu0 0
        %719 = vmatpush1.bf16.msra.mxu0 0
        %720 = vmatprep.subr.bf16.mxu0 0
        %721 = vmatpush1.bf16.msra.mxu0 0
        %722 = vmatprep.subr.bf16.mxu0 0
        %723 = vmatpush1.bf16.msra.mxu0 0
        %724 = vmatprep.subr.bf16.mxu0 0
        %725 = vmatpush1.bf16.msra.mxu0 0
        %726 = vmatprep.subr.bf16.mxu0 0
        %727 = vmatpush1.bf16.msra.mxu0 0
        %728 = vmatprep.subr.bf16.mxu0 0
        %729 = vmatpush1.bf16.msra.mxu0 0
        %730 = vmatprep.subr.bf16.mxu0 0
        %731 = vmatpush1.bf16.msra.mxu0 0
        %732 = vmatprep.subr.bf16.mxu0 0
        %733 = vmatpush1.bf16.msra.mxu0 0
        %734 = vmatprep.subr.bf16.mxu0 0
        %735 = vmatpush1.bf16.msra.mxu0 0
        %736 = vmatprep.subr.bf16.mxu0 0
        %737 = vmatpush1.bf16.msra.mxu0 0
        %738 = vmatprep.subr.bf16.mxu0 0
        %739 = vmatpush1.bf16.msra.mxu0 0
        %740 = vmatprep.subr.bf16.mxu0 0
        %741 = vmatpush1.bf16.msra.mxu0 0
        %742 = vmatprep.subr.bf16.mxu0 0
        %743 = vmatpush1.bf16.msra.mxu0 0
        %744 = vmatprep.subr.bf16.mxu0 0
        %745 = vmatpush1.bf16.msra.mxu0 0
        %746 = vmatprep.mubr.bf16.mxu0 0
        %747 = vmatmul.mubr.bf16.gmra.mrb[0].mxu0 %v712
        %v748 = vpop.f32.mrb[0].mxu0
        %v749 = vadd.f32 0.0, %v748
        %v750 = vpop.f32.mrb[0].mxu0
        %v751 = vpop.f32.mrb[0].mxu0
        %v752 = vpop.f32.mrb[0].mxu0
        %753 = vdwg.mxu0
        %v754 = vmul.f32 %v749, 0.25
        %756 = vrot.lane.b32.xlu0 %v754, 112
        %v757 = vpop.permute.xlu0 %756
        %759 = vrot.lane.b32.xlu0 %v754, 96
        %v760 = vpop.permute.xlu0 %759
        %762 = vrot.lane.b32.xlu0 %v754, 80
        %v763 = vpop.permute.xlu0 %762
        %v765 = vcombine.low %v754, %v760
        %v766 = vcombine.high %v754, %v760
        %v768 = vunpack.c.l.s4 1983009808
        %v769 = vunpack.c.0.s8 %v768
        %v770 = vlaneseq
        %v771 = vshrl.u32 %v770, 7
        %v772 = vsub.s32 %v769, %v771
        %v773 = vrot.slane %v765, %v772
        %v775 = vunpack.c.l.s4 1983009808
        %v776 = vunpack.c.0.s8 %v775
        %v777 = vlaneseq
        %v778 = vshrl.u32 %v777, 7
        %v779 = vsub.s32 %v776, %v778
        %v780 = vrot.slane %v766, %v779
        %v781 = vcombine.low %v757, %v763
        %v782 = vcombine.high %v757, %v763
        %v784 = vunpack.c.l.s4 1983009808
        %v785 = vunpack.c.0.s8 %v784
        %v786 = vlaneseq
        %v787 = vshrl.u32 %v786, 7
        %v788 = vsub.s32 %v785, %v787
        %v789 = vrot.slane %v781, %v788
        %v791 = vunpack.c.l.s4 1983009808
        %v792 = vunpack.c.0.s8 %v791
        %v793 = vlaneseq
        %v794 = vshrl.u32 %v793, 7
        %v795 = vsub.s32 %v792, %v794
        %v796 = vrot.slane %v782, %v795
        %v797 = vcombine.low %v773, %v789
        %v798 = vcombine.high %v773, %v789
        %v800 = vunpack.c.l.s4 1934713408
        %v801 = vunpack.c.0.s8 %v800
        %v802 = vlaneseq
        %v803 = vshrl.u32 %v802, 7
        %v804 = vsub.s32 %v801, %v803
        %v805 = vrot.slane %v797, %v804
        %v807 = vunpack.c.l.s4 1934713408
        %v808 = vunpack.c.0.s8 %v807
        %v809 = vlaneseq
        %v810 = vshrl.u32 %v809, 7
        %v811 = vsub.s32 %v808, %v810
        %v812 = vrot.slane %v798, %v811
        %v813 = vcombine.low %v780, %v796
        %v814 = vcombine.high %v780, %v796
        %v816 = vunpack.c.l.s4 1934713408
        %v817 = vunpack.c.0.s8 %v816
        %v818 = vlaneseq
        %v819 = vshrl.u32 %v818, 7
        %v820 = vsub.s32 %v817, %v819
        %v821 = vrot.slane %v813, %v820
        %v823 = vunpack.c.l.s4 1934713408
        %v824 = vunpack.c.0.s8 %v823
        %v825 = vlaneseq
        %v826 = vshrl.u32 %v825, 7
        %v827 = vsub.s32 %v824, %v826
        %v828 = vrot.slane %v814, %v827
        %v829 = vcombine.high %v805, 0.0
        %v830 = vcombine.high %v812, 0.0
        %v831 = vcombine.high %v821, 0.0
        %v832 = vcombine.high %v828, 0.0
        %v833 = vcombine.low %v805, %v812
        %v835 = vunpack.c.l.s4 1983009808
        %v836 = vunpack.c.0.s8 %v835
        %v837 = vlaneseq
        %v838 = vshrl.u32 %v837, 7
        %v839 = vsub.s32 %v836, %v838
        %v840 = vrot.slane %v833, %v839
        %v841 = vcombine.low %v829, %v830
        %v843 = vunpack.c.l.s4 1983009808
        %v844 = vunpack.c.0.s8 %v843
        %v845 = vlaneseq
        %v846 = vshrl.u32 %v845, 7
        %v847 = vsub.s32 %v844, %v846
        %v848 = vrot.slane %v841, %v847
        %v849 = vcombine.low %v821, %v828
        %v851 = vunpack.c.l.s4 1983009808
        %v852 = vunpack.c.0.s8 %v851
        %v853 = vlaneseq
        %v854 = vshrl.u32 %v853, 7
        %v855 = vsub.s32 %v852, %v854
        %v856 = vrot.slane %v849, %v855
        %v857 = vcombine.low %v831, %v832
        %v859 = vunpack.c.l.s4 1983009808
        %v860 = vunpack.c.0.s8 %v859
        %v861 = vlaneseq
        %v862 = vshrl.u32 %v861, 7
        %v863 = vsub.s32 %v860, %v862
        %v864 = vrot.slane %v857, %v863
        %v865 = vcombine.low %v840, %v848
        %v866 = vcombine.high %v840, %v848
        %v868 = vunpack.c.l.s4 1934713408
        %v869 = vunpack.c.0.s8 %v868
        %v870 = vlaneseq
        %v871 = vshrl.u32 %v870, 7
        %v872 = vsub.s32 %v869, %v871
        %v873 = vrot.slane %v865, %v872
        %v875 = vunpack.c.l.s4 1934713408
        %v876 = vunpack.c.0.s8 %v875
        %v877 = vlaneseq
        %v878 = vshrl.u32 %v877, 7
        %v879 = vsub.s32 %v876, %v878
        %v880 = vrot.slane %v866, %v879
        %v881 = vcombine.low %v856, %v864
        %v882 = vcombine.high %v856, %v864
        %v884 = vunpack.c.l.s4 1934713408
        %v885 = vunpack.c.0.s8 %v884
        %v886 = vlaneseq
        %v887 = vshrl.u32 %v886, 7
        %v888 = vsub.s32 %v885, %v887
        %v889 = vrot.slane %v881, %v888
        %v891 = vunpack.c.l.s4 1934713408
        %v892 = vunpack.c.0.s8 %v891
        %v893 = vlaneseq
        %v894 = vshrl.u32 %v893, 7
        %v895 = vsub.s32 %v892, %v894
        %v896 = vrot.slane %v882, %v895
        %v897 = vcombine.low %v873, %v889
        %v898 = vcombine.high %v873, %v889
        %v899 = vcombine.low %v880, %v896
        %v900 = vcombine.high %v880, %v896
        %v901 = vpack.c.bf16 %v897, %v897
        %v902 = vpack.c.bf16 %v898, %v898
        %v903 = vpack.c.bf16 %v899, %v899
        %v904 = vpack.c.bf16 %v900, %v900
        %v905 = vld [vmem:[#allocation3] sm:$0xf]
        %v906 = vld [vmem:[#allocation3 + $0x4] sm:$0xf]
        %v907 = vld [vmem:[#allocation3 + $0x8] sm:$0xf]
        %v908 = vld [vmem:[#allocation3 + $0xc] sm:$0xf]
        %v909 = vld [vmem:[#allocation4] sm:$0xf]
        %v910 = vld [vmem:[#allocation4 + $0x4] sm:$0xf]
        %v911 = vld [vmem:[#allocation4 + $0x8] sm:$0xf]
        %v912 = vld [vmem:[#allocation4 + $0xc] sm:$0xf]
        %vm913 = vcmask 130048
        %v915 = vsel %vm913, %v901, 0
        %v918 = vsel %vm913, %v905, 0
        %920 = vmatprep.subr.bf16.mxu0 0
        %921 = vmatpush1.bf16.xpose.msra.mxu0 %v918
        %922 = vmatprep.subr.bf16.mxu0 0
        %923 = vmatpush1.bf16.xpose.msra.mxu0 0
        %924 = vmatprep.subr.bf16.mxu0 0
        %925 = vmatpush1.bf16.xpose.msra.mxu0 0
        %926 = vmatprep.subr.bf16.mxu0 0
        %927 = vmatpush1.bf16.xpose.msra.mxu0 0
        %928 = vmatprep.subr.bf16.mxu0 0
        %929 = vmatpush1.bf16.xpose.msra.mxu0 0
        %930 = vmatprep.subr.bf16.mxu0 0
        %931 = vmatpush1.bf16.xpose.msra.mxu0 0
        %932 = vmatprep.subr.bf16.mxu0 0
        %933 = vmatpush1.bf16.xpose.msra.mxu0 0
        %934 = vmatprep.subr.bf16.mxu0 0
        %935 = vmatpush1.bf16.xpose.msra.mxu0 0
        %936 = vmatprep.subr.bf16.mxu0 0
        %937 = vmatpush1.bf16.xpose.msra.mxu0 0
        %938 = vmatprep.subr.bf16.mxu0 0
        %939 = vmatpush1.bf16.xpose.msra.mxu0 0
        %940 = vmatprep.subr.bf16.mxu0 0
        %941 = vmatpush1.bf16.xpose.msra.mxu0 0
        %942 = vmatprep.subr.bf16.mxu0 0
        %943 = vmatpush1.bf16.xpose.msra.mxu0 0
        %944 = vmatprep.subr.bf16.mxu0 0
        %945 = vmatpush1.bf16.xpose.msra.mxu0 0
        %946 = vmatprep.subr.bf16.mxu0 0
        %947 = vmatpush1.bf16.xpose.msra.mxu0 0
        %948 = vmatprep.subr.bf16.mxu0 0
        %949 = vmatpush1.bf16.xpose.msra.mxu0 0
        %950 = vmatprep.subr.bf16.mxu0 0
        %951 = vmatpush1.bf16.xpose.msra.mxu0 0
        %952 = vmatprep.mubr.bf16.mxu0 0
        %953 = vmatmul.mubr.bf16.gmra.mrb[0].mxu0 %v915
        %v954 = vpop.f32.mrb[0].mxu0
        %v955 = vadd.f32 0.0, %v954
        %v956 = vpop.f32.mrb[0].mxu0
        %v957 = vpop.f32.mrb[0].mxu0
        %v958 = vpop.f32.mrb[0].mxu0
        %959 = vdwg.mxu0
        %v961 = vsel %vm913, %v902, 0
        %v964 = vsel %vm913, %v906, 0
        %966 = vmatprep.subr.bf16.mxu0 0
        %967 = vmatpush1.bf16.xpose.msra.mxu0 %v964
        %968 = vmatprep.subr.bf16.mxu0 0
        %969 = vmatpush1.bf16.xpose.msra.mxu0 0
        %970 = vmatprep.subr.bf16.mxu0 0
        %971 = vmatpush1.bf16.xpose.msra.mxu0 0
        %972 = vmatprep.subr.bf16.mxu0 0
        %973 = vmatpush1.bf16.xpose.msra.mxu0 0
        %974 = vmatprep.subr.bf16.mxu0 0
        %975 = vmatpush1.bf16.xpose.msra.mxu0 0
        %976 = vmatprep.subr.bf16.mxu0 0
        %977 = vmatpush1.bf16.xpose.msra.mxu0 0
        %978 = vmatprep.subr.bf16.mxu0 0
        %979 = vmatpush1.bf16.xpose.msra.mxu0 0
        %980 = vmatprep.subr.bf16.mxu0 0
        %981 = vmatpush1.bf16.xpose.msra.mxu0 0
        %982 = vmatprep.subr.bf16.mxu0 0
        %983 = vmatpush1.bf16.xpose.msra.mxu0 0
        %984 = vmatprep.subr.bf16.mxu0 0
        %985 = vmatpush1.bf16.xpose.msra.mxu0 0
        %986 = vmatprep.subr.bf16.mxu0 0
        %987 = vmatpush1.bf16.xpose.msra.mxu0 0
        %988 = vmatprep.subr.bf16.mxu0 0
        %989 = vmatpush1.bf16.xpose.msra.mxu0 0
        %990 = vmatprep.subr.bf16.mxu0 0
        %991 = vmatpush1.bf16.xpose.msra.mxu0 0
        %992 = vmatprep.subr.bf16.mxu0 0
        %993 = vmatpush1.bf16.xpose.msra.mxu0 0
        %994 = vmatprep.subr.bf16.mxu0 0
        %995 = vmatpush1.bf16.xpose.msra.mxu0 0
        %996 = vmatprep.subr.bf16.mxu0 0
        %997 = vmatpush1.bf16.xpose.msra.mxu0 0
        %998 = vmatprep.mubr.bf16.mxu0 0
        %999 = vmatmul.mubr.bf16.gmra.mrb[0].mxu0 %v961
        %v1000 = vpop.f32.mrb[0].mxu0
        %v1001 = vadd.f32 0.0, %v1000
        %v1002 = vpop.f32.mrb[0].mxu0
        %v1003 = vpop.f32.mrb[0].mxu0
        %v1004 = vpop.f32.mrb[0].mxu0
        %1005 = vdwg.mxu0
        %v1007 = vsel %vm913, %v903, 0
        %v1010 = vsel %vm913, %v907, 0
        %1012 = vmatprep.subr.bf16.mxu0 0
        %1013 = vmatpush1.bf16.xpose.msra.mxu0 %v1010
        %1014 = vmatprep.subr.bf16.mxu0 0
        %1015 = vmatpush1.bf16.xpose.msra.mxu0 0
        %1016 = vmatprep.subr.bf16.mxu0 0
        %1017 = vmatpush1.bf16.xpose.msra.mxu0 0
        %1018 = vmatprep.subr.bf16.mxu0 0
        %1019 = vmatpush1.bf16.xpose.msra.mxu0 0
        %1020 = vmatprep.subr.bf16.mxu0 0
        %1021 = vmatpush1.bf16.xpose.msra.mxu0 0
        %1022 = vmatprep.subr.bf16.mxu0 0
        %1023 = vmatpush1.bf16.xpose.msra.mxu0 0
        %1024 = vmatprep.subr.bf16.mxu0 0
        %1025 = vmatpush1.bf16.xpose.msra.mxu0 0
        %1026 = vmatprep.subr.bf16.mxu0 0
        %1027 = vmatpush1.bf16.xpose.msra.mxu0 0
        %1028 = vmatprep.subr.bf16.mxu0 0
        %1029 = vmatpush1.bf16.xpose.msra.mxu0 0
        %1030 = vmatprep.subr.bf16.mxu0 0
        %1031 = vmatpush1.bf16.xpose.msra.mxu0 0
        %1032 = vmatprep.subr.bf16.mxu0 0
        %1033 = vmatpush1.bf16.xpose.msra.mxu0 0
        %1034 = vmatprep.subr.bf16.mxu0 0
        %1035 = vmatpush1.bf16.xpose.msra.mxu0 0
        %1036 = vmatprep.subr.bf16.mxu0 0
        %1037 = vmatpush1.bf16.xpose.msra.mxu0 0
        %1038 = vmatprep.subr.bf16.mxu0 0
        %1039 = vmatpush1.bf16.xpose.msra.mxu0 0
        %1040 = vmatprep.subr.bf16.mxu0 0
        %1041 = vmatpush1.bf16.xpose.msra.mxu0 0
        %1042 = vmatprep.subr.bf16.mxu0 0
        %1043 = vmatpush1.bf16.xpose.msra.mxu0 0
        %1044 = vmatprep.mubr.bf16.mxu0 0
        %1045 = vmatmul.mubr.bf16.gmra.mrb[0].mxu0 %v1007
        %v1046 = vpop.f32.mrb[0].mxu0
        %v1047 = vadd.f32 0.0, %v1046
        %v1048 = vpop.f32.mrb[0].mxu0
        %v1049 = vpop.f32.mrb[0].mxu0
        %v1050 = vpop.f32.mrb[0].mxu0
        %1051 = vdwg.mxu0
        %v1053 = vsel %vm913, %v904, 0
        %v1056 = vsel %vm913, %v908, 0
        %1058 = vmatprep.subr.bf16.mxu0 0
        %1059 = vmatpush1.bf16.xpose.msra.mxu0 %v1056
        %1060 = vmatprep.subr.bf16.mxu0 0
        %1061 = vmatpush1.bf16.xpose.msra.mxu0 0
        %1062 = vmatprep.subr.bf16.mxu0 0
        %1063 = vmatpush1.bf16.xpose.msra.mxu0 0
        %1064 = vmatprep.subr.bf16.mxu0 0
        %1065 = vmatpush1.bf16.xpose.msra.mxu0 0
        %1066 = vmatprep.subr.bf16.mxu0 0
        %1067 = vmatpush1.bf16.xpose.msra.mxu0 0
        %1068 = vmatprep.subr.bf16.mxu0 0
        %1069 = vmatpush1.bf16.xpose.msra.mxu0 0
        %1070 = vmatprep.subr.bf16.mxu0 0
        %1071 = vmatpush1.bf16.xpose.msra.mxu0 0
        %1072 = vmatprep.subr.bf16.mxu0 0
        %1073 = vmatpush1.bf16.xpose.msra.mxu0 0
        %1074 = vmatprep.subr.bf16.mxu0 0
        %1075 = vmatpush1.bf16.xpose.msra.mxu0 0
        %1076 = vmatprep.subr.bf16.mxu0 0
        %1077 = vmatpush1.bf16.xpose.msra.mxu0 0
        %1078 = vmatprep.subr.bf16.mxu0 0
        %1079 = vmatpush1.bf16.xpose.msra.mxu0 0
        %1080 = vmatprep.subr.bf16.mxu0 0
        %1081 = vmatpush1.bf16.xpose.msra.mxu0 0
        %1082 = vmatprep.subr.bf16.mxu0 0
        %1083 = vmatpush1.bf16.xpose.msra.mxu0 0
        %1084 = vmatprep.subr.bf16.mxu0 0
        %1085 = vmatpush1.bf16.xpose.msra.mxu0 0
        %1086 = vmatprep.subr.bf16.mxu0 0
        %1087 = vmatpush1.bf16.xpose.msra.mxu0 0
        %1088 = vmatprep.subr.bf16.mxu0 0
        %1089 = vmatpush1.bf16.xpose.msra.mxu0 0
        %1090 = vmatprep.mubr.bf16.mxu0 0
        %1091 = vmatmul.mubr.bf16.gmra.mrb[0].mxu0 %v1053
        %v1092 = vpop.f32.mrb[0].mxu0
        %v1093 = vadd.f32 0.0, %v1092
        %v1094 = vpop.f32.mrb[0].mxu0
        %v1095 = vpop.f32.mrb[0].mxu0
        %v1096 = vpop.f32.mrb[0].mxu0
        %1097 = vdwg.mxu0
        %vm1098 = vcmask 64512
        %v1099 = vsel %vm1098, %v955, -inf
        %1100 = vmax.xlane.f32.xlu0 %v1099
        %v1101 = vpop.xlane.xlu0 %1100
        %v1102 = vsel %vm1098, %v1001, -inf
        %1103 = vmax.xlane.f32.xlu0 %v1102
        %v1104 = vpop.xlane.xlu0 %1103
        %v1105 = vsel %vm1098, %v1047, -inf
        %1106 = vmax.xlane.f32.xlu0 %v1105
        %v1107 = vpop.xlane.xlu0 %1106
        %v1108 = vsel %vm1098, %v1093, -inf
        %1109 = vmax.xlane.f32.xlu0 %v1108
        %v1110 = vpop.xlane.xlu0 %1109
        %v1111 = vmax.f32 %v1101, -1e+30
        %v1112 = vmax.f32 %v1104, -1e+30
        %v1113 = vmax.f32 %v1107, -1e+30
        %v1114 = vmax.f32 %v1110, -1e+30
        %v1115 = vsub.f32 -1e+30, %v1111
        %v1116 = vsub.f32 -1e+30, %v1112
        %v1117 = vsub.f32 -1e+30, %v1113
        %v1118 = vsub.f32 -1e+30, %v1114
        %v1119 = vmul.f32 %v1115, 1.442695
        %v1120 = vpow.pop %v1119
        %v1121 = vmul.f32 %v1116, 1.442695
        %v1122 = vpow.pop %v1121
        %v1123 = vmul.f32 %v1117, 1.442695
        %v1124 = vpow.pop %v1123
        %v1125 = vmul.f32 %v1118, 1.442695
        %v1126 = vpow.pop %v1125
        %v1127 = vsub.f32 %v955, %v1111
        %v1128 = vsub.f32 %v1001, %v1112
        %v1129 = vsub.f32 %v1047, %v1113
        %v1130 = vsub.f32 %v1093, %v1114
        %v1131 = vmul.f32 %v1127, 1.442695
        %v1132 = vpow.pop %v1131
        %v1133 = vmul.f32 %v1128, 1.442695
        %v1134 = vpow.pop %v1133
        %v1135 = vmul.f32 %v1129, 1.442695
        %v1136 = vpow.pop %v1135
        %v1137 = vmul.f32 %v1130, 1.442695
        %v1138 = vpow.pop %v1137
        %v1139 = vmul.f32 %v1120, 0.0
        %v1140 = vmul.f32 %v1122, 0.0
        %v1141 = vmul.f32 %v1124, 0.0
        %v1142 = vmul.f32 %v1126, 0.0
        %v1143 = vsel %vm1098, %v1132, 0.0
        %1144 = vadd.xlane.f32.xlu0 %v1143
        %v1145 = vpop.xlane.xlu0 %1144
        %v1146 = vsel %vm1098, %v1134, 0.0
        %1147 = vadd.xlane.f32.xlu0 %v1146
        %v1148 = vpop.xlane.xlu0 %1147
        %v1149 = vsel %vm1098, %v1136, 0.0
        %1150 = vadd.xlane.f32.xlu0 %v1149
        %v1151 = vpop.xlane.xlu0 %1150
        %v1152 = vsel %vm1098, %v1138, 0.0
        %1153 = vadd.xlane.f32.xlu0 %v1152
        %v1154 = vpop.xlane.xlu0 %1153
        %v1155 = vadd.f32 %v1139, %v1145
        %v1156 = vadd.f32 %v1140, %v1148
        %v1157 = vadd.f32 %v1141, %v1151
        %v1158 = vadd.f32 %v1142, %v1154
        %v1159 = vpack.c.bf16 %v1132, %v1132
        %v1160 = vpack.c.bf16 %v1134, %v1134
        %v1161 = vpack.c.bf16 %v1136, %v1136
        %v1162 = vpack.c.bf16 %v1138, %v1138
        %v1164 = vsel %vm1098, %v1159, 0
        %vm1166 = vcmask 1043456
        %v1168 = vsel %vm1166, %v909, 0
        %1170 = vmatprep.subr.bf16.mxu0 0
        %1171 = vmatpush1.bf16.msra.mxu0 %v1168
        %1172 = vmatprep.subr.bf16.mxu0 0
        %1173 = vmatpush1.bf16.msra.mxu0 0
        %1174 = vmatprep.subr.bf16.mxu0 0
        %1175 = vmatpush1.bf16.msra.mxu0 0
        %1176 = vmatprep.subr.bf16.mxu0 0
        %1177 = vmatpush1.bf16.msra.mxu0 0
        %1178 = vmatprep.subr.bf16.mxu0 0
        %1179 = vmatpush1.bf16.msra.mxu0 0
        %1180 = vmatprep.subr.bf16.mxu0 0
        %1181 = vmatpush1.bf16.msra.mxu0 0
        %1182 = vmatprep.subr.bf16.mxu0 0
        %1183 = vmatpush1.bf16.msra.mxu0 0
        %1184 = vmatprep.subr.bf16.mxu0 0
        %1185 = vmatpush1.bf16.msra.mxu0 0
        %1186 = vmatprep.subr.bf16.mxu0 0
        %1187 = vmatpush1.bf16.msra.mxu0 0
        %1188 = vmatprep.subr.bf16.mxu0 0
        %1189 = vmatpush1.bf16.msra.mxu0 0
        %1190 = vmatprep.subr.bf16.mxu0 0
        %1191 = vmatpush1.bf16.msra.mxu0 0
        %1192 = vmatprep.subr.bf16.mxu0 0
        %1193 = vmatpush1.bf16.msra.mxu0 0
        %1194 = vmatprep.subr.bf16.mxu0 0
        %1195 = vmatpush1.bf16.msra.mxu0 0
        %1196 = vmatprep.subr.bf16.mxu0 0
        %1197 = vmatpush1.bf16.msra.mxu0 0
        %1198 = vmatprep.subr.bf16.mxu0 0
        %1199 = vmatpush1.bf16.msra.mxu0 0
        %1200 = vmatprep.subr.bf16.mxu0 0
        %1201 = vmatpush1.bf16.msra.mxu0 0
        %1202 = vmatprep.mubr.bf16.mxu0 0
        %1203 = vmatmul.mubr.bf16.gmra.mrb[0].mxu0 %v1164
        %v1204 = vpop.f32.mrb[0].mxu0
        %v1205 = vadd.f32 0.0, %v1204
        %v1206 = vpop.f32.mrb[0].mxu0
        %v1207 = vpop.f32.mrb[0].mxu0
        %v1208 = vpop.f32.mrb[0].mxu0
        %1209 = vdwg.mxu0
        %v1211 = vsel %vm1098, %v1160, 0
        %v1214 = vsel %vm1166, %v910, 0
        %1216 = vmatprep.subr.bf16.mxu0 0
        %1217 = vmatpush1.bf16.msra.mxu0 %v1214
        %1218 = vmatprep.subr.bf16.mxu0 0
        %1219 = vmatpush1.bf16.msra.mxu0 0
        %1220 = vmatprep.subr.bf16.mxu0 0
        %1221 = vmatpush1.bf16.msra.mxu0 0
        %1222 = vmatprep.subr.bf16.mxu0 0
        %1223 = vmatpush1.bf16.msra.mxu0 0
        %1224 = vmatprep.subr.bf16.mxu0 0
        %1225 = vmatpush1.bf16.msra.mxu0 0
        %1226 = vmatprep.subr.bf16.mxu0 0
        %1227 = vmatpush1.bf16.msra.mxu0 0
        %1228 = vmatprep.subr.bf16.mxu0 0
        %1229 = vmatpush1.bf16.msra.mxu0 0
        %1230 = vmatprep.subr.bf16.mxu0 0
        %1231 = vmatpush1.bf16.msra.mxu0 0
        %1232 = vmatprep.subr.bf16.mxu0 0
        %1233 = vmatpush1.bf16.msra.mxu0 0
        %1234 = vmatprep.subr.bf16.mxu0 0
        %1235 = vmatpush1.bf16.msra.mxu0 0
        %1236 = vmatprep.subr.bf16.mxu0 0
        %1237 = vmatpush1.bf16.msra.mxu0 0
        %1238 = vmatprep.subr.bf16.mxu0 0
        %1239 = vmatpush1.bf16.msra.mxu0 0
        %1240 = vmatprep.subr.bf16.mxu0 0
        %1241 = vmatpush1.bf16.msra.mxu0 0
        %1242 = vmatprep.subr.bf16.mxu0 0
        %1243 = vmatpush1.bf16.msra.mxu0 0
        %1244 = vmatprep.subr.bf16.mxu0 0
        %1245 = vmatpush1.bf16.msra.mxu0 0
        %1246 = vmatprep.subr.bf16.mxu0 0
        %1247 = vmatpush1.bf16.msra.mxu0 0
        %1248 = vmatprep.mubr.bf16.mxu0 0
        %1249 = vmatmul.mubr.bf16.gmra.mrb[0].mxu0 %v1211
        %v1250 = vpop.f32.mrb[0].mxu0
        %v1251 = vadd.f32 0.0, %v1250
        %v1252 = vpop.f32.mrb[0].mxu0
        %v1253 = vpop.f32.mrb[0].mxu0
        %v1254 = vpop.f32.mrb[0].mxu0
        %1255 = vdwg.mxu0
        %v1257 = vsel %vm1098, %v1161, 0
        %v1260 = vsel %vm1166, %v911, 0
        %1262 = vmatprep.subr.bf16.mxu0 0
        %1263 = vmatpush1.bf16.msra.mxu0 %v1260
        %1264 = vmatprep.subr.bf16.mxu0 0
        %1265 = vmatpush1.bf16.msra.mxu0 0
        %1266 = vmatprep.subr.bf16.mxu0 0
        %1267 = vmatpush1.bf16.msra.mxu0 0
        %1268 = vmatprep.subr.bf16.mxu0 0
        %1269 = vmatpush1.bf16.msra.mxu0 0
        %1270 = vmatprep.subr.bf16.mxu0 0
        %1271 = vmatpush1.bf16.msra.mxu0 0
        %1272 = vmatprep.subr.bf16.mxu0 0
        %1273 = vmatpush1.bf16.msra.mxu0 0
        %1274 = vmatprep.subr.bf16.mxu0 0
        %1275 = vmatpush1.bf16.msra.mxu0 0
        %1276 = vmatprep.subr.bf16.mxu0 0
        %1277 = vmatpush1.bf16.msra.mxu0 0
        %1278 = vmatprep.subr.bf16.mxu0 0
        %1279 = vmatpush1.bf16.msra.mxu0 0
        %1280 = vmatprep.subr.bf16.mxu0 0
        %1281 = vmatpush1.bf16.msra.mxu0 0
        %1282 = vmatprep.subr.bf16.mxu0 0
        %1283 = vmatpush1.bf16.msra.mxu0 0
        %1284 = vmatprep.subr.bf16.mxu0 0
        %1285 = vmatpush1.bf16.msra.mxu0 0
        %1286 = vmatprep.subr.bf16.mxu0 0
        %1287 = vmatpush1.bf16.msra.mxu0 0
        %1288 = vmatprep.subr.bf16.mxu0 0
        %1289 = vmatpush1.bf16.msra.mxu0 0
        %1290 = vmatprep.subr.bf16.mxu0 0
        %1291 = vmatpush1.bf16.msra.mxu0 0
        %1292 = vmatprep.subr.bf16.mxu0 0
        %1293 = vmatpush1.bf16.msra.mxu0 0
        %1294 = vmatprep.mubr.bf16.mxu0 0
        %1295 = vmatmul.mubr.bf16.gmra.mrb[0].mxu0 %v1257
        %v1296 = vpop.f32.mrb[0].mxu0
        %v1297 = vadd.f32 0.0, %v1296
        %v1298 = vpop.f32.mrb[0].mxu0
        %v1299 = vpop.f32.mrb[0].mxu0
        %v1300 = vpop.f32.mrb[0].mxu0
        %1301 = vdwg.mxu0
        %v1303 = vsel %vm1098, %v1162, 0
        %v1306 = vsel %vm1166, %v912, 0
        %1308 = vmatprep.subr.bf16.mxu0 0
        %1309 = vmatpush1.bf16.msra.mxu0 %v1306
        %1310 = vmatprep.subr.bf16.mxu0 0
        %1311 = vmatpush1.bf16.msra.mxu0 0
        %1312 = vmatprep.subr.bf16.mxu0 0
        %1313 = vmatpush1.bf16.msra.mxu0 0
        %1314 = vmatprep.subr.bf16.mxu0 0
        %1315 = vmatpush1.bf16.msra.mxu0 0
        %1316 = vmatprep.subr.bf16.mxu0 0
        %1317 = vmatpush1.bf16.msra.mxu0 0
        %1318 = vmatprep.subr.bf16.mxu0 0
        %1319 = vmatpush1.bf16.msra.mxu0 0
        %1320 = vmatprep.subr.bf16.mxu0 0
        %1321 = vmatpush1.bf16.msra.mxu0 0
        %1322 = vmatprep.subr.bf16.mxu0 0
        %1323 = vmatpush1.bf16.msra.mxu0 0
        %1324 = vmatprep.subr.bf16.mxu0 0
        %1325 = vmatpush1.bf16.msra.mxu0 0
        %1326 = vmatprep.subr.bf16.mxu0 0
        %1327 = vmatpush1.bf16.msra.mxu0 0
        %1328 = vmatprep.subr.bf16.mxu0 0
        %1329 = vmatpush1.bf16.msra.mxu0 0
        %1330 = vmatprep.subr.bf16.mxu0 0
        %1331 = vmatpush1.bf16.msra.mxu0 0
        %1332 = vmatprep.subr.bf16.mxu0 0
        %1333 = vmatpush1.bf16.msra.mxu0 0
        %1334 = vmatprep.subr.bf16.mxu0 0
        %1335 = vmatpush1.bf16.msra.mxu0 0
        %1336 = vmatprep.subr.bf16.mxu0 0
        %1337 = vmatpush1.bf16.msra.mxu0 0
        %1338 = vmatprep.subr.bf16.mxu0 0
        %1339 = vmatpush1.bf16.msra.mxu0 0
        %1340 = vmatprep.mubr.bf16.mxu0 0
        %1341 = vmatmul.mubr.bf16.gmra.mrb[0].mxu0 %v1303
        %v1342 = vpop.f32.mrb[0].mxu0
        %v1343 = vadd.f32 0.0, %v1342
        %v1344 = vpop.f32.mrb[0].mxu0
        %v1345 = vpop.f32.mrb[0].mxu0
        %v1346 = vpop.f32.mrb[0].mxu0
        %1347 = vdwg.mxu0
        %v1348 = vadd.f32 %v1139, %v1205
        %v1349 = vadd.f32 %v1140, %v1251
        %v1350 = vadd.f32 %v1141, %v1297
        %v1351 = vadd.f32 %v1142, %v1343
        %v1352 = vrcp.pop %v1155
        %v1353 = vrcp.pop %v1156
        %v1354 = vrcp.pop %v1157
        %v1355 = vrcp.pop %v1158
        %v1356 = vmul.f32 %v1348, %v1352
        %v1357 = vmul.f32 %v1349, %v1353
        %v1358 = vmul.f32 %v1350, %v1354
        %v1359 = vmul.f32 %v1351, %v1355
        %v1360 = vcombine.low %v1356, %v1358
        %v1361 = vcombine.high %v1356, %v1358
        %v1363 = vunpack.c.l.s4 1983009808
        %v1364 = vunpack.c.0.s8 %v1363
        %v1365 = vlaneseq
        %v1366 = vshrl.u32 %v1365, 7
        %v1367 = vsub.s32 %v1364, %v1366
        %v1368 = vrot.slane %v1360, %v1367
        %v1370 = vunpack.c.l.s4 1983009808
        %v1371 = vunpack.c.0.s8 %v1370
        %v1372 = vlaneseq
        %v1373 = vshrl.u32 %v1372, 7
        %v1374 = vsub.s32 %v1371, %v1373
        %v1375 = vrot.slane %v1361, %v1374
        %v1376 = vcombine.low %v1357, %v1359
        %v1377 = vcombine.high %v1357, %v1359
        %v1379 = vunpack.c.l.s4 1983009808
        %v1380 = vunpack.c.0.s8 %v1379
        %v1381 = vlaneseq
        %v1382 = vshrl.u32 %v1381, 7
        %v1383 = vsub.s32 %v1380, %v1382
        %v1384 = vrot.slane %v1376, %v1383
        %v1386 = vunpack.c.l.s4 1983009808
        %v1387 = vunpack.c.0.s8 %v1386
        %v1388 = vlaneseq
        %v1389 = vshrl.u32 %v1388, 7
        %v1390 = vsub.s32 %v1387, %v1389
        %v1391 = vrot.slane %v1377, %v1390
        %v1392 = vcombine.low %v1368, %v1384
        %v1393 = vcombine.high %v1368, %v1384
        %v1395 = vunpack.c.l.s4 1934713408
        %v1396 = vunpack.c.0.s8 %v1395
        %v1397 = vlaneseq
        %v1398 = vshrl.u32 %v1397, 7
        %v1399 = vsub.s32 %v1396, %v1398
        %v1400 = vrot.slane %v1392, %v1399
        %v1402 = vunpack.c.l.s4 1934713408
        %v1403 = vunpack.c.0.s8 %v1402
        %v1404 = vlaneseq
        %v1405 = vshrl.u32 %v1404, 7
        %v1406 = vsub.s32 %v1403, %v1405
        %v1407 = vrot.slane %v1393, %v1406
        %v1408 = vcombine.low %v1375, %v1391
        %v1409 = vcombine.high %v1375, %v1391
        %v1411 = vunpack.c.l.s4 1934713408
        %v1412 = vunpack.c.0.s8 %v1411
        %v1413 = vlaneseq
        %v1414 = vshrl.u32 %v1413, 7
        %v1415 = vsub.s32 %v1412, %v1414
        %v1416 = vrot.slane %v1408, %v1415
        %v1418 = vunpack.c.l.s4 1934713408
        %v1419 = vunpack.c.0.s8 %v1418
        %v1420 = vlaneseq
        %v1421 = vshrl.u32 %v1420, 7
        %v1422 = vsub.s32 %v1419, %v1421
        %v1423 = vrot.slane %v1409, %v1422
        %v1424 = vcombine.high %v1400, 0.0
        %v1425 = vcombine.high %v1407, 0.0
        %v1426 = vcombine.high %v1416, 0.0
        %v1427 = vcombine.high %v1423, 0.0
        %v1428 = vcombine.low %v1400, %v1407
        %v1430 = vunpack.c.l.s4 1983009808
        %v1431 = vunpack.c.0.s8 %v1430
        %v1432 = vlaneseq
        %v1433 = vshrl.u32 %v1432, 7
        %v1434 = vsub.s32 %v1431, %v1433
        %v1435 = vrot.slane %v1428, %v1434
        %v1436 = vcombine.low %v1424, %v1425
        %v1438 = vunpack.c.l.s4 1983009808
        %v1439 = vunpack.c.0.s8 %v1438
        %v1440 = vlaneseq
        %v1441 = vshrl.u32 %v1440, 7
        %v1442 = vsub.s32 %v1439, %v1441
        %v1443 = vrot.slane %v1436, %v1442
        %v1444 = vcombine.low %v1416, %v1423
        %v1446 = vunpack.c.l.s4 1983009808
        %v1447 = vunpack.c.0.s8 %v1446
        %v1448 = vlaneseq
        %v1449 = vshrl.u32 %v1448, 7
        %v1450 = vsub.s32 %v1447, %v1449
        %v1451 = vrot.slane %v1444, %v1450
        %v1452 = vcombine.low %v1426, %v1427
        %v1454 = vunpack.c.l.s4 1983009808
        %v1455 = vunpack.c.0.s8 %v1454
        %v1456 = vlaneseq
        %v1457 = vshrl.u32 %v1456, 7
        %v1458 = vsub.s32 %v1455, %v1457
        %v1459 = vrot.slane %v1452, %v1458
        %v1460 = vcombine.low %v1435, %v1443
        %v1461 = vcombine.high %v1435, %v1443
        %v1463 = vunpack.c.l.s4 1934713408
        %v1464 = vunpack.c.0.s8 %v1463
        %v1465 = vlaneseq
        %v1466 = vshrl.u32 %v1465, 7
        %v1467 = vsub.s32 %v1464, %v1466
        %v1468 = vrot.slane %v1460, %v1467
        %v1470 = vunpack.c.l.s4 1934713408
        %v1471 = vunpack.c.0.s8 %v1470
        %v1472 = vlaneseq
        %v1473 = vshrl.u32 %v1472, 7
        %v1474 = vsub.s32 %v1471, %v1473
        %v1475 = vrot.slane %v1461, %v1474
        %v1476 = vcombine.low %v1451, %v1459
        %v1477 = vcombine.high %v1451, %v1459
        %v1479 = vunpack.c.l.s4 1934713408
        %v1480 = vunpack.c.0.s8 %v1479
        %v1481 = vlaneseq
        %v1482 = vshrl.u32 %v1481, 7
        %v1483 = vsub.s32 %v1480, %v1482
        %v1484 = vrot.slane %v1476, %v1483
        %v1486 = vunpack.c.l.s4 1934713408
        %v1487 = vunpack.c.0.s8 %v1486
        %v1488 = vlaneseq
        %v1489 = vshrl.u32 %v1488, 7
        %v1490 = vsub.s32 %v1487, %v1489
        %v1491 = vrot.slane %v1477, %v1490
        %v1492 = vcombine.low %v1468, %v1484
        %v1493 = vcombine.high %v1468, %v1484
        %v1494 = vcombine.low %v1475, %v1491
        %v1495 = vcombine.high %v1475, %v1491
        %1497 = vrot.lane.b32.xlu0 %v1493, 16
        %v1498 = vpop.permute.xlu0 %1497
        %1501 = vrot.lane.b32.xlu0 %v1494, 32
        %v1502 = vpop.permute.xlu0 %1501
        %1505 = vrot.lane.b32.xlu0 %v1495, 48
        %v1506 = vpop.permute.xlu0 %1505
        %v1508 = vsel %vm913, %v1492, %v1498
        %v1509 = vsel %vm710, %v1508, %v1502
        %vm1510 = vcmask 392192
        %v1511 = vsel %vm1510, %v1509, %v1506
        %v1512 = vpack.c.bf16 %v1511, %v1511
        %v1513 = vld [vmem:[%s4] sm:$0xf]
        %v1514 = vld [vmem:[%s4 + $0x4] sm:$0xf]
        %v1515 = vld [vmem:[%s4 + $0x8] sm:$0xf]
        %v1516 = vld [vmem:[%s4 + $0xc] sm:$0xf]
        %v1517 = vld [vmem:[%s4 + $0x10] sm:$0xf]
        %v1518 = vld [vmem:[%s4 + $0x14] sm:$0xf]
        %v1519 = vld [vmem:[%s4 + $0x18] sm:$0xf]
        %v1520 = vld [vmem:[%s4 + $0x1c] sm:$0xf]
        %v1521 = vld [vmem:[%s5] sm:$0x1]
        %v1523 = vlaneseq
        %v1524 = vshrl.u32 %v1523, 7
        %v1525 = vsub.s32 0, %v1524
        %v1526 = vrot.slane %v1521, %v1525
        %v1536 = vunpack.c.l.b16 %v1513
        %v1537 = vunpack.c.l.b16 %v1514
        %v1538 = vunpack.c.l.b16 %v1515
        %v1539 = vunpack.c.l.b16 %v1516
        %v1540 = vunpack.c.l.b16 %v1517
        %v1541 = vunpack.c.l.b16 %v1518
        %v1542 = vunpack.c.l.b16 %v1519
        %v1543 = vunpack.c.l.b16 %v1520
        %v1544 = vpack.c.b16 %v1537, %v1536
        %v1545 = vpack.c.b16 %v1539, %v1538
        %v1546 = vpack.c.b16 %v1541, %v1540
        %v1547 = vpack.c.b16 %v1543, %v1542
        %vm1552 = vcmask 523264
        %v1554 = vsel %vm1552, %v1512, 0
        %1556 = vmatprep.subr.bf16.mxu0 0
        %1557 = vmatpush1.bf16.msra.mxu0 %v1544
        %1558 = vmatprep.subr.bf16.mxu0 0
        %1559 = vmatpush1.bf16.msra.mxu0 %v1545
        %1560 = vmatprep.subr.bf16.mxu0 0
        %1561 = vmatpush1.bf16.msra.mxu0 %v1546
        %1562 = vmatprep.subr.bf16.mxu0 0
        %1563 = vmatpush1.bf16.msra.mxu0 %v1547
        %1564 = vmatprep.subr.bf16.mxu0 0
        %1565 = vmatpush1.bf16.msra.mxu0 0
        %1566 = vmatprep.subr.bf16.mxu0 0
        %1567 = vmatpush1.bf16.msra.mxu0 0
        %1568 = vmatprep.subr.bf16.mxu0 0
        %1569 = vmatpush1.bf16.msra.mxu0 0
        %1570 = vmatprep.subr.bf16.mxu0 0
        %1571 = vmatpush1.bf16.msra.mxu0 0
        %1572 = vmatprep.subr.bf16.mxu0 0
        %1573 = vmatpush1.bf16.msra.mxu0 0
        %1574 = vmatprep.subr.bf16.mxu0 0
        %1575 = vmatpush1.bf16.msra.mxu0 0
        %1576 = vmatprep.subr.bf16.mxu0 0
        %1577 = vmatpush1.bf16.msra.mxu0 0
        %1578 = vmatprep.subr.bf16.mxu0 0
        %1579 = vmatpush1.bf16.msra.mxu0 0
        %1580 = vmatprep.subr.bf16.mxu0 0
        %1581 = vmatpush1.bf16.msra.mxu0 0
        %1582 = vmatprep.subr.bf16.mxu0 0
        %1583 = vmatpush1.bf16.msra.mxu0 0
        %1584 = vmatprep.subr.bf16.mxu0 0
        %1585 = vmatpush1.bf16.msra.mxu0 0
        %1586 = vmatprep.subr.bf16.mxu0 0
        %1587 = vmatpush1.bf16.msra.mxu0 0
        %1588 = vmatprep.mubr.bf16.mxu0 0
        %1589 = vmatmul.mubr.bf16.gmra.mrb[0].mxu0 %v1554
        %v1590 = vpop.f32.mrb[0].mxu0
        %v1591 = vadd.f32 %v1526, %v1590
        %v1592 = vpop.f32.mrb[0].mxu0
        %v1593 = vpop.f32.mrb[0].mxu0
        %v1594 = vpop.f32.mrb[0].mxu0
        %1595 = vdwg.mxu0
        %1596 = vst.msk [vmem:[%s256] sm:$0xff] %vm710, %v1591
        %s1597 = sand.u32 %s173, 1
        %s1598 = scalar_lea.sflag [#allocation6], %s1597
        %s1599 = sand.u32 %s173, 1
        %s1600 = smul.addr %s1599, 8
        %s1601 = scalar_lea.vmem [#allocation5], %s1600
        // Predicated region
        $region49: #{tpu_custom_call.1} parent=43 // pred_check
          %p1602 = pneg %p183
        $region50: #{tpu_custom_call.1} parent=43 // pred_check_branch
          %1604 = sbr.rel (%p1602) target = $region52
        $region51: #{tpu_custom_call.1} parent=43 // pred_region
          %s1606 = ssub.s32 128, 128
          %1607 = vsyncadd %s1598, %s1606
          %s1608 = sadd.s32 %s25, %s24
          %s1609 = smul.addr %s1608, 128
          %s1610 = scalar_lea.hbm %s6, %s1609
          %s1612 = sshll.u32 %s1601, 4
          %s1613 = int_to_ptr.vmem [resolvable:$true] %s1612
          %1615 = dma.vmem_to_hbm [thread:$0]  %s1613, 128, %s1610, %s1598
        $region52: #{tpu_custom_call.1} parent=43 // pred_fallthru
          _
      $region44: #{tpu_custom_call.1} parent=5 // pred_fallthru
        _
      %p1616 = scmp.le.s32.totalorder 2, %s15
      // Predicated region
      $region53: #{tpu_custom_call.1} parent=5 // pred_check
        %p1617 = pneg %p1616
      $region54: #{tpu_custom_call.1} parent=5 // pred_check_branch
        %1619 = sbr.rel (%p1617) target = $region56
      $region55: #{tpu_custom_call.1} parent=5 // pred_region
        %s1620 = ssub.s32 %s15, 2
        // Predicated region
        $region57: #{tpu_custom_call.1} parent=55 // pred_check
          %p1621 = pneg %p189
        $region58: #{tpu_custom_call.1} parent=55 // pred_check_branch
          %1623 = sbr.rel (%p1621) target = $region60
        $region59: #{tpu_custom_call.1} parent=55 // pred_region
          %s1624 = sand.u32 %s174, 1
          %s1625 = scalar_lea.sflag [#allocation6], %s1624
          %s1626 = sand.u32 %s174, 1
          %s1627 = smul.addr %s1626, 8
          %s1628 = scalar_lea.vmem [#allocation5], %s1627
          %1629 = dma.done %s1625, 128
        $region60: #{tpu_custom_call.1} parent=55 // pred_fallthru
          _
      $region56: #{tpu_custom_call.1} parent=5 // pred_fallthru
        _
    $region6: #{tpu_custom_call.1} parent=1 // loop_footer
      %s19 = sadd.s32 1, %s15
    $region7: #{tpu_custom_call.1} parent=1 // loop_footer_branch
      %14 = sbr.rel target = $region3
    $region8: #{tpu_custom_call.1} parent=1 // loop_exit
      _
    %1630 = vsyncpa [#allocation6], 1
    %s1631 = scalar_lea.sflag [#allocation6], 1
    %1632 = vsyncpa %s1631, 1

</llo_original>
